<compile_context>
chip_gen: v6e
topology: v6e:2x2x1
jax: 0.10.0
libtpu: 0.0.40
codegen_flags: <defaults>
</compile_context>

<pallas_src>
import numpy as np
import jax
import jax.numpy as jnp
from jax.experimental import pallas as pl
from jax.experimental.pallas import tpu as pltpu

LEAKY_SLOPE = 0.2
BN_EPS = 1e-5
K = 4  # conv kernel size


# --------------------------------------------------------------- host-side prep
def _band(w4d, kh, w_in, w_out, stride, pad):
    """One kh tap of a conv weight (Cout,Cin,4,4) as a banded (W_in*Cin, W_out*Cout)
    matmul operand; W zero-padding is folded in (out-of-range taps dropped)."""
    w = np.asarray(w4d, np.float32)
    cout, cin, _, kw_n = w.shape
    b = np.zeros((w_in * cin, w_out * cout), np.float32)
    for j in range(w_out):
        for kw in range(kw_n):
            col = stride * j + kw - pad
            if 0 <= col < w_in:
                b[col * cin:(col + 1) * cin, j * cout:(j + 1) * cout] = w[:, :, kh, kw].T
    return b


def _pair_weights(w4d, w_in, w_out, stride, pad):
    """kh-concatenated operands for the row-pair activation layout.

    Pair row j lanes = [padded row 2j (w,c) | padded row 2j+1 (w,c)]; conv output
    row i reads pair i against W01=[B_kh0;B_kh1] and pair i+1 against W23=[B_kh2;B_kh3],
    so one stride-2 / pad-1 conv is exactly two matmuls with K = 2*W_in*C_in.
    """
    w01 = np.concatenate([_band(w4d, 0, w_in, w_out, stride, pad),
                          _band(w4d, 1, w_in, w_out, stride, pad)], axis=0)
    w23 = np.concatenate([_band(w4d, 2, w_in, w_out, stride, pad),
                          _band(w4d, 3, w_in, w_out, stride, pad)], axis=0)
    return w01, w23


def _final_weight(w4d, w_in):
    """4x4 valid conv as a single (4*W_in*Cin, Cout) operand (row blocks = feature rows)."""
    return np.concatenate([_band(w4d, kh, w_in, 1, 1, 0) for kh in range(K)], axis=0)


def _bn_reduce(wo, c, count):
    """(wo*c, c): sums the (w, c) lane layout over w and divides by count."""
    return np.tile(np.eye(c, dtype=np.float32), (wo, 1)) / float(count)


def _bn_tile(wo, c):
    """(c, wo*c): broadcasts per-channel values back onto the (w, c) lane layout."""
    return np.tile(np.eye(c, dtype=np.float32), (1, wo))


# --------------------------------------------------------------------- builder
def build_discriminator(ws, bn_gammas, bn_betas, batch, img_channels, feature_d,
                        spatial):
    """Returns (forward_fn, operands): forward_fn(x_nchw, operands) -> (batch,)."""
    w1, w2, w3, w4 = ws
    bn_g2, bn_g3 = bn_gammas
    bn_b2, bn_b3 = bn_betas

    n = batch
    c0 = img_channels
    c1, c2, c3 = feature_d, feature_d * 2, feature_d * 4
    h0 = spatial
    h1, h2, h3 = h0 // 2, h0 // 4, h0 // 8
    assert h3 == K, "final 4x4 valid conv expects a 4x4 feature map (spatial=32)"

    cols0 = h0 * c0     # lane width of one (w, c) activation row, per layer input
    cols1 = h1 * c1
    cols2 = h2 * c2
    cols3 = h3 * c3

    # ---- precomputed kernel operands (one-time host work) --------------------
    w011, w231 = _pair_weights(w1, h0, h1, 2, 1)          # (2*cols0, cols1)
    w012, w232 = _pair_weights(w2, h1, h2, 2, 1)          # (2*cols1, cols2)
    w013, w233 = _pair_weights(w3, h2, h3, 2, 1)          # (2*cols2, cols3)
    w4s = _final_weight(w4, h3)                           # (4*cols3, 1)
    operands = (
        jnp.asarray(w011, jnp.bfloat16), jnp.asarray(w231, jnp.bfloat16),
        jnp.asarray(w012, jnp.bfloat16), jnp.asarray(w232, jnp.bfloat16),
        jnp.asarray(w013, jnp.bfloat16), jnp.asarray(w233, jnp.bfloat16),
        jnp.asarray(w4s, jnp.bfloat16),
        jnp.asarray(_bn_reduce(h2, c2, n * h2 * h2), jnp.float32),   # (cols2, c2)
        jnp.asarray(_bn_tile(h2, c2), jnp.float32),                   # (c2, cols2)
        jnp.asarray(bn_g2, jnp.float32).reshape(1, -1),
        jnp.asarray(bn_b2, jnp.float32).reshape(1, -1),
        jnp.asarray(_bn_reduce(h3, c3, n * h3 * h3), jnp.float32),   # (cols3, c3)
        jnp.asarray(_bn_tile(h3, c3), jnp.float32),                   # (c3, cols3)
        jnp.asarray(bn_g3, jnp.float32).reshape(1, -1),
        jnp.asarray(bn_b3, jnp.float32).reshape(1, -1),
    )

    # ------------------------------------------------------------- fused kernel
    def kernel(x_ref,
               w011_ref, w231_ref, w012_ref, w232_ref, w013_ref, w233_ref, w4_ref,
               r2_ref, t2_ref, g2_ref, b2_ref, r3_ref, t3_ref, g3_ref, b3_ref,
               out_ref, p2_ref, p3_ref):

        def lrelu(v):
            return jnp.where(v >= 0.0, v, LEAKY_SLOPE * v)

        def conv_pair(src_ref, w01_ref, w23_ref, ho):
            # One stride-2/pad-1 conv layer as TWO MXU matmuls over all samples:
            # M = n*ho (batch folded into M), K = 2*W_in*C_in (kh taps concatenated).
            # Both LHS slabs are contiguous reads (sublane offsets 0 and n).
            m = n * ho
            a = src_ref[0:m, :]          # pair i   -> kh = 0, 1
            b = src_ref[n:n + m, :]      # pair i+1 -> kh = 2, 3
            acc = jnp.dot(a, w01_ref[...], preferred_element_type=jnp.float32)
            return acc + jnp.dot(b, w23_ref[...], preferred_element_type=jnp.float32)

        def batchnorm(x, r_ref, t_ref, g_ref, be_ref):
            # Training-mode batch statistics, one pass (E[x^2]-E[x]^2) in f32.
            # Skinny reduce (wo*c, c) / broadcast (c, wo*c) operands; the two
            # stat rows and the two epilogue rows share one matmul each.
            srow = jnp.sum(x, axis=0, keepdims=True)
            sqrow = jnp.sum(x * x, axis=0, keepdims=True)
            stats = jnp.dot(jnp.concatenate([srow, sqrow], axis=0), r_ref[...],
                            preferred_element_type=jnp.float32)          # (2, c)
            mean = stats[0:1, :]
            var = stats[1:2, :] - mean * mean
            scale_c = jax.lax.rsqrt(var + BN_EPS) * g_ref[...]            # EUP rsqrt
            shift_c = be_ref[...] - mean * scale_c
            ss = jnp.dot(jnp.concatenate([scale_c, shift_c], axis=0), t_ref[...],
                         preferred_element_type=jnp.float32)              # (2, wo*c)
            return x * ss[0:1, :] + ss[1:2, :]

        def store_pairs(dst_ref, val, h, cols):
            # val: (n*h, cols) f32 conv output, rows ordered (row i, sample s).
            # Repack into the next layer's bf16 row-pair layout with two
            # lane-dense 128-wide block stores: even rows -> second lane half of
            # pair i//2, odd rows -> first lane half of pair (i+1)//2.  The zero
            # H-pad halves (pair 0 / pair h//2) were written once at kernel start.
            v = val.astype(dst_ref.dtype)
            evens = jnp.concatenate(
                [v[(2 * j) * n:(2 * j + 1) * n, :] for j in range(h // 2)], axis=0)
            odds = jnp.concatenate(
                [v[(2 * j + 1) * n:(2 * j + 2) * n, :] for j in range(h // 2)], axis=0)
            half = (h // 2) * n
            dst_ref[0:half, cols:2 * cols] = evens
            dst_ref[n:n + half, 0:cols] = odds

        # Zero ONLY the H-padding border half-rows (no full-buffer zero fill).
        p2_ref[0:n, 0:cols1] = jnp.zeros((n, cols1), p2_ref.dtype)
        p2_ref[(h1 // 2) * n:(h1 // 2 + 1) * n, cols1:2 * cols1] = (
            jnp.zeros((n, cols1), p2_ref.dtype))
        p3_ref[0:n, 0:cols2] = jnp.zeros((n, cols2), p3_ref.dtype)
        p3_ref[(h2 // 2) * n:(h2 // 2 + 1) * n, cols2:2 * cols2] = (
            jnp.zeros((n, cols2), p3_ref.dtype))

        # layer 1: conv(4,2,1) + LeakyReLU
        o1 = lrelu(conv_pair(x_ref, w011_ref, w231_ref, h1))        # (n*h1, cols1)
        store_pairs(p2_ref, o1, h1, cols1)

        # layer 2: conv(4,2,1) + BatchNorm + LeakyReLU
        o2 = lrelu(batchnorm(conv_pair(p2_ref, w012_ref, w232_ref, h2),
                             r2_ref, t2_ref, g2_ref, b2_ref))        # (n*h2, cols2)
        store_pairs(p3_ref, o2, h2, cols2)

        # layer 3: conv(4,2,1) + BatchNorm + LeakyReLU
        o3 = lrelu(batchnorm(conv_pair(p3_ref, w013_ref, w233_ref, h3),
                             r3_ref, t3_ref, g3_ref, b3_ref))        # (n*h3, cols3)

        # layer 4: 4x4 valid conv + sigmoid, fused into ONE (n, 4*cols3) matmul.
        lhs = jnp.concatenate([o3[i * n:(i + 1) * n, :] for i in range(h3)],
                              axis=1).astype(jnp.bfloat16)           # (n, 4*cols3)
        logit = jnp.dot(lhs, w4_ref[...], preferred_element_type=jnp.float32)
        out_ref[...] = 1.0 / (1.0 + jnp.exp(-logit))                 # exact sigmoid

    # ------------------------------------------------------------- pallas_call
    def _full(shape):
        nd = len(shape)
        return pl.BlockSpec(shape, lambda i, _nd=nd: (0,) * _nd)

    x_pair_shape = ((h0 // 2 + 1) * n, 2 * cols0)

    flops = 0
    for ho, ci_cols, co_cols in ((h1, cols0, cols1), (h2, cols1, cols2),
                                 (h3, cols2, cols3)):
        flops += 2 * (2 * (n * ho) * (2 * ci_cols) * co_cols)   # two matmuls/layer
    flops += 2 * n * (4 * cols3)                                # final conv matmul
    flops += 2 * (2 * cols2 * c2 + 2 * c2 * cols2)              # BN skinny matmuls L2
    flops += 2 * (2 * cols3 * c3 + 2 * c3 * cols3)              # BN skinny matmuls L3
    bytes_accessed = 2 * x_pair_shape[0] * x_pair_shape[1] + 4 * n
    for o in operands:
        bytes_accessed += int(o.size) * o.dtype.itemsize
    cost = pl.CostEstimate(flops=int(flops),
                           transcendentals=int(c2 + c3 + n),
                           bytes_accessed=int(bytes_accessed))

    fused = pl.pallas_call(
        kernel,
        out_shape=jax.ShapeDtypeStruct((n, 1), jnp.float32),
        grid=(1,),
        in_specs=[_full(x_pair_shape)] + [_full(tuple(o.shape)) for o in operands],
        out_specs=_full((n, 1)),
        scratch_shapes=[
            pltpu.VMEM(((h1 // 2 + 1) * n, 2 * cols1), jnp.bfloat16),  # layer-2 input pairs
            pltpu.VMEM(((h2 // 2 + 1) * n, 2 * cols2), jnp.bfloat16),  # layer-3 input pairs
        ],
        compiler_params=pltpu.CompilerParams(dimension_semantics=("arbitrary",)),
        cost_estimate=cost,
    )

    @jax.jit
    def forward(x_nchw, ops):
        # One-time layout plumbing: NCHW -> NHWC, pad H by 1, fold consecutive
        # padded-row pairs onto lanes and order rows (pair j, sample s) so the
        # kernel reads whole-batch contiguous slabs (W padding is folded into
        # the banded weights).
        x = jnp.transpose(x_nchw, (0, 2, 3, 1))
        x = jnp.pad(x, ((0, 0), (1, 1), (0, 0), (0, 0)))
        x = x.reshape(n, h0 // 2 + 1, 2, h0, c0)
        x = jnp.transpose(x, (1, 0, 2, 3, 4))
        x = x.reshape((h0 // 2 + 1) * n, 2 * cols0).astype(jnp.bfloat16)
        return fused(x, *ops).reshape(-1)

    return forward, operands


# ------------------------------------------------------------------- reference
def _reference_forward(x, weights, gammas, betas):
    w1, w2, w3, w4 = weights
    g2, g3 = gammas
    b2, b3 = betas

    def conv(h, w, stride, pad):
        return jax.lax.conv_general_dilated(
            h, w, window_strides=(stride, stride),
            padding=[(pad, pad), (pad, pad)],
            dimension_numbers=("NCHW", "OIHW", "NCHW"))

    def lrelu(v):
        return jnp.where(v >= 0, v, LEAKY_SLOPE * v)

    def bn(v, g, b):
        mean = jnp.mean(v, axis=(0, 2, 3), keepdims=True)
        var = jnp.mean((v - mean) ** 2, axis=(0, 2, 3), keepdims=True)
        return (v - mean) * jax.lax.rsqrt(var + BN_EPS) * g.reshape(1, -1, 1, 1) \
               + b.reshape(1, -1, 1, 1)

    h = lrelu(conv(x, w1, 2, 1))
    h = lrelu(bn(conv(h, w2, 2, 1), g2, b2))
    h = lrelu(bn(conv(h, w3, 2, 1), g3, b3))
    h = 1.0 / (1.0 + jnp.exp(-conv(h, w4, 1, 0)))
    return h.reshape(-1)


# ------------------------------------------------------------------------ main
if __name__ == "__main__":
    key = jax.random.PRNGKey(0)
    batch, img_channels, spatial, feature_d = 2, 1, 32, 8  # 32 -> 16 -> 8 -> 4 -> 1

    ks = jax.random.split(key, 9)
    x = jax.random.normal(ks[0], (batch, img_channels, spatial, spatial), jnp.float32)

    # Conv weights (PyTorch layout: Cout, Cin, kh, kw), deterministic init.
    w1 = 0.05 * jax.random.normal(ks[1], (feature_d, img_channels, 4, 4), jnp.float32)
    w2 = 0.05 * jax.random.normal(ks[2], (feature_d * 2, feature_d, 4, 4), jnp.float32)
    w3 = 0.05 * jax.random.normal(ks[3], (feature_d * 4, feature_d * 2, 4, 4), jnp.float32)
    w4 = 0.05 * jax.random.normal(ks[4], (1, feature_d * 4, 4, 4), jnp.float32)

    # BatchNorm affine params (randomized to exercise the affine path).
    g2 = 1.0 + 0.1 * jax.random.normal(ks[5], (feature_d * 2,), jnp.float32)
    b2 = 0.1 * jax.random.normal(ks[6], (feature_d * 2,), jnp.float32)
    g3 = 1.0 + 0.1 * jax.random.normal(ks[7], (feature_d * 4,), jnp.float32)
    b3 = 0.1 * jax.random.normal(ks[8], (feature_d * 4,), jnp.float32)

    forward, operands = build_discriminator(
        (w1, w2, w3, w4), (g2, g3), (b2, b3),
        batch, img_channels, feature_d, spatial)

    out = jax.block_until_ready(forward(x, operands))

    ref = _reference_forward(x, (w1, w2, w3, w4), (g2, g3), (b2, b3))
    assert out.shape == (batch,), out.shape
    # bf16 MXU inputs (f32 accumulation) => looser tolerance than a pure-f32 path.
    assert jnp.allclose(out, ref, atol=3e-2, rtol=3e-2), (out, ref)

    print("KERNEL_OK")
</pallas_src>

<mosaic_0001>
module attributes {stable_mosaic.version = 11 : i64} {
  func.func @kernel(%arg0: i32, %arg1: memref<34x64xbf16, #tpu.memory_space<vmem>>, %arg2: memref<64x128xbf16, #tpu.memory_space<vmem>>, %arg3: memref<64x128xbf16, #tpu.memory_space<vmem>>, %arg4: memref<256x128xbf16, #tpu.memory_space<vmem>>, %arg5: memref<256x128xbf16, #tpu.memory_space<vmem>>, %arg6: memref<256x128xbf16, #tpu.memory_space<vmem>>, %arg7: memref<256x128xbf16, #tpu.memory_space<vmem>>, %arg8: memref<512x1xbf16, #tpu.memory_space<vmem>>, %arg9: memref<128x16xf32, #tpu.memory_space<vmem>>, %arg10: memref<16x128xf32, #tpu.memory_space<vmem>>, %arg11: memref<1x16xf32, #tpu.memory_space<vmem>>, %arg12: memref<1x16xf32, #tpu.memory_space<vmem>>, %arg13: memref<128x32xf32, #tpu.memory_space<vmem>>, %arg14: memref<32x128xf32, #tpu.memory_space<vmem>>, %arg15: memref<1x32xf32, #tpu.memory_space<vmem>>, %arg16: memref<1x32xf32, #tpu.memory_space<vmem>>, %arg17: memref<2x1xf32, #tpu.memory_space<vmem>>, %arg18: memref<18x256xbf16, #tpu.memory_space<vmem>>, %arg19: memref<10x256xbf16, #tpu.memory_space<vmem>>) attributes {dimension_semantics = [#tpu.dimension_semantics<arbitrary>], iteration_bounds = array<i64: 1>, scalar_prefetch = 0 : i64, scratch_operands = 2 : i64, tpu.core_type = #tpu.core_type<tc>, window_params = [{pipeline_mode = #tpu.pipeline_mode<synchronous>, transform_indices = @transform_0, window_bounds = array<i64: 34, 64>}, {pipeline_mode = #tpu.pipeline_mode<synchronous>, transform_indices = @transform_1, window_bounds = array<i64: 64, 128>}, {pipeline_mode = #tpu.pipeline_mode<synchronous>, transform_indices = @transform_2, window_bounds = array<i64: 64, 128>}, {pipeline_mode = #tpu.pipeline_mode<synchronous>, transform_indices = @transform_3, window_bounds = array<i64: 256, 128>}, {pipeline_mode = #tpu.pipeline_mode<synchronous>, transform_indices = @transform_4, window_bounds = array<i64: 256, 128>}, {pipeline_mode = #tpu.pipeline_mode<synchronous>, transform_indices = @transform_5, window_bounds = array<i64: 256, 128>}, {pipeline_mode = #tpu.pipeline_mode<synchronous>, transform_indices = @transform_6, window_bounds = array<i64: 256, 128>}, {pipeline_mode = #tpu.pipeline_mode<synchronous>, transform_indices = @transform_7, window_bounds = array<i64: 512, 1>}, {pipeline_mode = #tpu.pipeline_mode<synchronous>, transform_indices = @transform_8, window_bounds = array<i64: 128, 16>}, {pipeline_mode = #tpu.pipeline_mode<synchronous>, transform_indices = @transform_9, window_bounds = array<i64: 16, 128>}, {pipeline_mode = #tpu.pipeline_mode<synchronous>, transform_indices = @transform_10, window_bounds = array<i64: 1, 16>}, {pipeline_mode = #tpu.pipeline_mode<synchronous>, transform_indices = @transform_11, window_bounds = array<i64: 1, 16>}, {pipeline_mode = #tpu.pipeline_mode<synchronous>, transform_indices = @transform_12, window_bounds = array<i64: 128, 32>}, {pipeline_mode = #tpu.pipeline_mode<synchronous>, transform_indices = @transform_13, window_bounds = array<i64: 32, 128>}, {pipeline_mode = #tpu.pipeline_mode<synchronous>, transform_indices = @transform_14, window_bounds = array<i64: 1, 32>}, {pipeline_mode = #tpu.pipeline_mode<synchronous>, transform_indices = @transform_15, window_bounds = array<i64: 1, 32>}, {pipeline_mode = #tpu.pipeline_mode<synchronous>, transform_indices = @transform_16, window_bounds = array<i64: 2, 1>}]} {
    %cst = arith.constant 0.000000e+00 : bf16
    %0 = vector.broadcast %cst : bf16 to vector<2x128xbf16>
    %c0 = arith.constant 0 : index
    %c0_0 = arith.constant 0 : index
    %1 = vector.load %arg18[%c0, %c0_0] : memref<18x256xbf16, #tpu.memory_space<vmem>>, vector<2x128xbf16>
    tpu.vector_store %arg18[%c0, %c0_0], %0 {strides = array<i32>} : memref<18x256xbf16, #tpu.memory_space<vmem>>, vector<2x128xbf16>,
    %cst_1 = arith.constant 0.000000e+00 : bf16
    %2 = vector.broadcast %cst_1 : bf16 to vector<2x128xbf16>
    %c16 = arith.constant 16 : index
    %c128 = arith.constant 128 : index
    %3 = vector.load %arg18[%c16, %c128] : memref<18x256xbf16, #tpu.memory_space<vmem>>, vector<2x128xbf16>
    tpu.vector_store %arg18[%c16, %c128], %2 {strides = array<i32>} : memref<18x256xbf16, #tpu.memory_space<vmem>>, vector<2x128xbf16>,
    %cst_2 = arith.constant 0.000000e+00 : bf16
    %4 = vector.broadcast %cst_2 : bf16 to vector<2x128xbf16>
    %c0_3 = arith.constant 0 : index
    %c0_4 = arith.constant 0 : index
    %5 = vector.load %arg19[%c0_3, %c0_4] : memref<10x256xbf16, #tpu.memory_space<vmem>>, vector<2x128xbf16>
    tpu.vector_store %arg19[%c0_3, %c0_4], %4 {strides = array<i32>} : memref<10x256xbf16, #tpu.memory_space<vmem>>, vector<2x128xbf16>,
    %cst_5 = arith.constant 0.000000e+00 : bf16
    %6 = vector.broadcast %cst_5 : bf16 to vector<2x128xbf16>
    %c8 = arith.constant 8 : index
    %c128_6 = arith.constant 128 : index
    %7 = vector.load %arg19[%c8, %c128_6] : memref<10x256xbf16, #tpu.memory_space<vmem>>, vector<2x128xbf16>
    tpu.vector_store %arg19[%c8, %c128_6], %6 {strides = array<i32>} : memref<10x256xbf16, #tpu.memory_space<vmem>>, vector<2x128xbf16>,
    %c0_7 = arith.constant 0 : index
    %c0_8 = arith.constant 0 : index
    %8 = vector.load %arg1[%c0_7, %c0_8] : memref<34x64xbf16, #tpu.memory_space<vmem>>, vector<32x64xbf16>
    %c2 = arith.constant 2 : index
    %c0_9 = arith.constant 0 : index
    %9 = vector.load %arg1[%c2, %c0_9] : memref<34x64xbf16, #tpu.memory_space<vmem>>, vector<32x64xbf16>
    %c0_10 = arith.constant 0 : index
    %c0_11 = arith.constant 0 : index
    %10 = vector.load %arg2[%c0_10, %c0_11] : memref<64x128xbf16, #tpu.memory_space<vmem>>, vector<64x128xbf16>
    %cst_12 = arith.constant dense<0.000000e+00> : vector<32x128xf32>
    %11 = tpu.matmul %8, %10, %cst_12 {dimension_numbers = #tpu.dot_dimension_numbers<[1], [0], [0], [1], [0, 0, 1, 1], [], []>} : vector<32x64xbf16>, vector<64x128xbf16>, vector<32x128xf32> -> vector<32x128xf32>
    %c0_13 = arith.constant 0 : index
    %c0_14 = arith.constant 0 : index
    %12 = vector.load %arg3[%c0_13, %c0_14] : memref<64x128xbf16, #tpu.memory_space<vmem>>, vector<64x128xbf16>
    %cst_15 = arith.constant dense<0.000000e+00> : vector<32x128xf32>
    %13 = tpu.matmul %9, %12, %cst_15 {dimension_numbers = #tpu.dot_dimension_numbers<[1], [0], [0], [1], [0, 0, 1, 1], [], []>} : vector<32x64xbf16>, vector<64x128xbf16>, vector<32x128xf32> -> vector<32x128xf32>
    %14 = arith.addf %11, %13 : vector<32x128xf32>
    %cst_16 = arith.constant 0.000000e+00 : f32
    %15 = vector.broadcast %cst_16 : f32 to vector<32x128xf32>
    %16 = arith.cmpf oge, %14, %15 : vector<32x128xf32>
    %cst_17 = arith.constant 2.000000e-01 : f32
    %17 = vector.broadcast %cst_17 : f32 to vector<32x128xf32>
    %18 = arith.mulf %17, %14 : vector<32x128xf32>
    %19 = arith.select %16, %14, %18 : vector<32x128xi1>, vector<32x128xf32>
    %20 = arith.truncf %19 : vector<32x128xf32> to vector<32x128xbf16>
    %21 = vector.extract_strided_slice %20 {offsets = [0, 0], sizes = [2, 128], strides = [1, 1]} : vector<32x128xbf16> to vector<2x128xbf16>
    %22 = vector.extract_strided_slice %20 {offsets = [4, 0], sizes = [2, 128], strides = [1, 1]} : vector<32x128xbf16> to vector<2x128xbf16>
    %23 = vector.extract_strided_slice %20 {offsets = [8, 0], sizes = [2, 128], strides = [1, 1]} : vector<32x128xbf16> to vector<2x128xbf16>
    %24 = vector.extract_strided_slice %20 {offsets = [12, 0], sizes = [2, 128], strides = [1, 1]} : vector<32x128xbf16> to vector<2x128xbf16>
    %25 = vector.extract_strided_slice %20 {offsets = [16, 0], sizes = [2, 128], strides = [1, 1]} : vector<32x128xbf16> to vector<2x128xbf16>
    %26 = vector.extract_strided_slice %20 {offsets = [20, 0], sizes = [2, 128], strides = [1, 1]} : vector<32x128xbf16> to vector<2x128xbf16>
    %27 = vector.extract_strided_slice %20 {offsets = [24, 0], sizes = [2, 128], strides = [1, 1]} : vector<32x128xbf16> to vector<2x128xbf16>
    %28 = vector.extract_strided_slice %20 {offsets = [28, 0], sizes = [2, 128], strides = [1, 1]} : vector<32x128xbf16> to vector<2x128xbf16>
    %29 = tpu.concatenate %21, %22, %23, %24, %25, %26, %27, %28 in 0 : vector<2x128xbf16>, vector<2x128xbf16>, vector<2x128xbf16>, vector<2x128xbf16>, vector<2x128xbf16>, vector<2x128xbf16>, vector<2x128xbf16>, vector<2x128xbf16> -> vector<16x128xbf16>
    %30 = vector.extract_strided_slice %20 {offsets = [2, 0], sizes = [2, 128], strides = [1, 1]} : vector<32x128xbf16> to vector<2x128xbf16>
    %31 = vector.extract_strided_slice %20 {offsets = [6, 0], sizes = [2, 128], strides = [1, 1]} : vector<32x128xbf16> to vector<2x128xbf16>
    %32 = vector.extract_strided_slice %20 {offsets = [10, 0], sizes = [2, 128], strides = [1, 1]} : vector<32x128xbf16> to vector<2x128xbf16>
    %33 = vector.extract_strided_slice %20 {offsets = [14, 0], sizes = [2, 128], strides = [1, 1]} : vector<32x128xbf16> to vector<2x128xbf16>
    %34 = vector.extract_strided_slice %20 {offsets = [18, 0], sizes = [2, 128], strides = [1, 1]} : vector<32x128xbf16> to vector<2x128xbf16>
    %35 = vector.extract_strided_slice %20 {offsets = [22, 0], sizes = [2, 128], strides = [1, 1]} : vector<32x128xbf16> to vector<2x128xbf16>
    %36 = vector.extract_strided_slice %20 {offsets = [26, 0], sizes = [2, 128], strides = [1, 1]} : vector<32x128xbf16> to vector<2x128xbf16>
    %37 = vector.extract_strided_slice %20 {offsets = [30, 0], sizes = [2, 128], strides = [1, 1]} : vector<32x128xbf16> to vector<2x128xbf16>
    %38 = tpu.concatenate %30, %31, %32, %33, %34, %35, %36, %37 in 0 : vector<2x128xbf16>, vector<2x128xbf16>, vector<2x128xbf16>, vector<2x128xbf16>, vector<2x128xbf16>, vector<2x128xbf16>, vector<2x128xbf16>, vector<2x128xbf16> -> vector<16x128xbf16>
    %c0_18 = arith.constant 0 : index
    %c128_19 = arith.constant 128 : index
    %39 = vector.load %arg18[%c0_18, %c128_19] : memref<18x256xbf16, #tpu.memory_space<vmem>>, vector<16x128xbf16>
    tpu.vector_store %arg18[%c0_18, %c128_19], %29 {strides = array<i32>} : memref<18x256xbf16, #tpu.memory_space<vmem>>, vector<16x128xbf16>,
    %c2_20 = arith.constant 2 : index
    %c0_21 = arith.constant 0 : index
    %40 = vector.load %arg18[%c2_20, %c0_21] : memref<18x256xbf16, #tpu.memory_space<vmem>>, vector<16x128xbf16>
    tpu.vector_store %arg18[%c2_20, %c0_21], %38 {strides = array<i32>} : memref<18x256xbf16, #tpu.memory_space<vmem>>, vector<16x128xbf16>,
    %c0_22 = arith.constant 0 : index
    %c0_23 = arith.constant 0 : index
    %41 = vector.load %arg18[%c0_22, %c0_23] : memref<18x256xbf16, #tpu.memory_space<vmem>>, vector<16x256xbf16>
    %c2_24 = arith.constant 2 : index
    %c0_25 = arith.constant 0 : index
    %42 = vector.load %arg18[%c2_24, %c0_25] : memref<18x256xbf16, #tpu.memory_space<vmem>>, vector<16x256xbf16>
    %c0_26 = arith.constant 0 : index
    %c0_27 = arith.constant 0 : index
    %43 = vector.load %arg4[%c0_26, %c0_27] : memref<256x128xbf16, #tpu.memory_space<vmem>>, vector<256x128xbf16>
    %cst_28 = arith.constant dense<0.000000e+00> : vector<16x128xf32>
    %44 = tpu.matmul %41, %43, %cst_28 {dimension_numbers = #tpu.dot_dimension_numbers<[1], [0], [0], [1], [0, 0, 1, 1], [], []>} : vector<16x256xbf16>, vector<256x128xbf16>, vector<16x128xf32> -> vector<16x128xf32>
    %c0_29 = arith.constant 0 : index
    %c0_30 = arith.constant 0 : index
    %45 = vector.load %arg5[%c0_29, %c0_30] : memref<256x128xbf16, #tpu.memory_space<vmem>>, vector<256x128xbf16>
    %cst_31 = arith.constant dense<0.000000e+00> : vector<16x128xf32>
    %46 = tpu.matmul %42, %45, %cst_31 {dimension_numbers = #tpu.dot_dimension_numbers<[1], [0], [0], [1], [0, 0, 1, 1], [], []>} : vector<16x256xbf16>, vector<256x128xbf16>, vector<16x128xf32> -> vector<16x128xf32>
    %47 = arith.addf %44, %46 : vector<16x128xf32>
    %cst_32 = arith.constant dense<0.000000e+00> : vector<128xf32>
    %48 = vector.multi_reduction <add>, %47, %cst_32 [0] : vector<16x128xf32> to vector<128xf32>
    %49 = vector.shape_cast %48 : vector<128xf32> to vector<1x128xf32>
    %50 = arith.mulf %47, %47 : vector<16x128xf32>
    %cst_33 = arith.constant dense<0.000000e+00> : vector<128xf32>
    %51 = vector.multi_reduction <add>, %50, %cst_33 [0] : vector<16x128xf32> to vector<128xf32>
    %52 = vector.shape_cast %51 : vector<128xf32> to vector<1x128xf32>
    %53 = tpu.concatenate %49, %52 in 0 : vector<1x128xf32>, vector<1x128xf32> -> vector<2x128xf32>
    %c0_34 = arith.constant 0 : index
    %c0_35 = arith.constant 0 : index
    %54 = vector.load %arg9[%c0_34, %c0_35] : memref<128x16xf32, #tpu.memory_space<vmem>>, vector<128x16xf32>
    %cst_36 = arith.constant dense<0.000000e+00> : vector<2x16xf32>
    %55 = tpu.matmul %53, %54, %cst_36 {dimension_numbers = #tpu.dot_dimension_numbers<[1], [0], [0], [1], [0, 0, 1, 1], [], []>} : vector<2x128xf32>, vector<128x16xf32>, vector<2x16xf32> -> vector<2x16xf32>
    %56 = vector.extract_strided_slice %55 {offsets = [0, 0], sizes = [1, 16], strides = [1, 1]} : vector<2x16xf32> to vector<1x16xf32>
    %57 = vector.extract_strided_slice %55 {offsets = [1, 0], sizes = [1, 16], strides = [1, 1]} : vector<2x16xf32> to vector<1x16xf32>
    %58 = arith.mulf %56, %56 : vector<1x16xf32>
    %59 = arith.subf %57, %58 : vector<1x16xf32>
    %cst_37 = arith.constant 9.99999974E-6 : f32
    %60 = vector.broadcast %cst_37 : f32 to vector<1x16xf32>
    %61 = arith.addf %59, %60 : vector<1x16xf32>
    %62 = math.rsqrt %61 : vector<1x16xf32>
    %c0_38 = arith.constant 0 : index
    %c0_39 = arith.constant 0 : index
    %63 = vector.load %arg11[%c0_38, %c0_39] : memref<1x16xf32, #tpu.memory_space<vmem>>, vector<1x16xf32>
    %64 = arith.mulf %62, %63 : vector<1x16xf32>
    %c0_40 = arith.constant 0 : index
    %c0_41 = arith.constant 0 : index
    %65 = vector.load %arg12[%c0_40, %c0_41] : memref<1x16xf32, #tpu.memory_space<vmem>>, vector<1x16xf32>
    %66 = arith.mulf %56, %64 : vector<1x16xf32>
    %67 = arith.subf %65, %66 : vector<1x16xf32>
    %68 = tpu.concatenate %64, %67 in 0 : vector<1x16xf32>, vector<1x16xf32> -> vector<2x16xf32>
    %c0_42 = arith.constant 0 : index
    %c0_43 = arith.constant 0 : index
    %69 = vector.load %arg10[%c0_42, %c0_43] : memref<16x128xf32, #tpu.memory_space<vmem>>, vector<16x128xf32>
    %cst_44 = arith.constant dense<0.000000e+00> : vector<2x128xf32>
    %70 = tpu.matmul %68, %69, %cst_44 {dimension_numbers = #tpu.dot_dimension_numbers<[1], [0], [0], [1], [0, 0, 1, 1], [], []>} : vector<2x16xf32>, vector<16x128xf32>, vector<2x128xf32> -> vector<2x128xf32>
    %71 = vector.extract_strided_slice %70 {offsets = [0, 0], sizes = [1, 128], strides = [1, 1]} : vector<2x128xf32> to vector<1x128xf32>
    %72 = vector.broadcast %71 : vector<1x128xf32> to vector<16x128xf32>
    %73 = arith.mulf %47, %72 : vector<16x128xf32>
    %74 = vector.extract_strided_slice %70 {offsets = [1, 0], sizes = [1, 128], strides = [1, 1]} : vector<2x128xf32> to vector<1x128xf32>
    %75 = vector.broadcast %74 : vector<1x128xf32> to vector<16x128xf32>
    %76 = arith.addf %73, %75 : vector<16x128xf32>
    %cst_45 = arith.constant 0.000000e+00 : f32
    %77 = vector.broadcast %cst_45 : f32 to vector<16x128xf32>
    %78 = arith.cmpf oge, %76, %77 : vector<16x128xf32>
    %cst_46 = arith.constant 2.000000e-01 : f32
    %79 = vector.broadcast %cst_46 : f32 to vector<16x128xf32>
    %80 = arith.mulf %79, %76 : vector<16x128xf32>
    %81 = arith.select %78, %76, %80 : vector<16x128xi1>, vector<16x128xf32>
    %82 = arith.truncf %81 : vector<16x128xf32> to vector<16x128xbf16>
    %83 = vector.extract_strided_slice %82 {offsets = [0, 0], sizes = [2, 128], strides = [1, 1]} : vector<16x128xbf16> to vector<2x128xbf16>
    %84 = vector.extract_strided_slice %82 {offsets = [4, 0], sizes = [2, 128], strides = [1, 1]} : vector<16x128xbf16> to vector<2x128xbf16>
    %85 = vector.extract_strided_slice %82 {offsets = [8, 0], sizes = [2, 128], strides = [1, 1]} : vector<16x128xbf16> to vector<2x128xbf16>
    %86 = vector.extract_strided_slice %82 {offsets = [12, 0], sizes = [2, 128], strides = [1, 1]} : vector<16x128xbf16> to vector<2x128xbf16>
    %87 = tpu.concatenate %83, %84, %85, %86 in 0 : vector<2x128xbf16>, vector<2x128xbf16>, vector<2x128xbf16>, vector<2x128xbf16> -> vector<8x128xbf16>
    %88 = vector.extract_strided_slice %82 {offsets = [2, 0], sizes = [2, 128], strides = [1, 1]} : vector<16x128xbf16> to vector<2x128xbf16>
    %89 = vector.extract_strided_slice %82 {offsets = [6, 0], sizes = [2, 128], strides = [1, 1]} : vector<16x128xbf16> to vector<2x128xbf16>
    %90 = vector.extract_strided_slice %82 {offsets = [10, 0], sizes = [2, 128], strides = [1, 1]} : vector<16x128xbf16> to vector<2x128xbf16>
    %91 = vector.extract_strided_slice %82 {offsets = [14, 0], sizes = [2, 128], strides = [1, 1]} : vector<16x128xbf16> to vector<2x128xbf16>
    %92 = tpu.concatenate %88, %89, %90, %91 in 0 : vector<2x128xbf16>, vector<2x128xbf16>, vector<2x128xbf16>, vector<2x128xbf16> -> vector<8x128xbf16>
    %c0_47 = arith.constant 0 : index
    %c128_48 = arith.constant 128 : index
    %93 = vector.load %arg19[%c0_47, %c128_48] : memref<10x256xbf16, #tpu.memory_space<vmem>>, vector<8x128xbf16>
    tpu.vector_store %arg19[%c0_47, %c128_48], %87 {strides = array<i32>} : memref<10x256xbf16, #tpu.memory_space<vmem>>, vector<8x128xbf16>,
    %c2_49 = arith.constant 2 : index
    %c0_50 = arith.constant 0 : index
    %94 = vector.load %arg19[%c2_49, %c0_50] : memref<10x256xbf16, #tpu.memory_space<vmem>>, vector<8x128xbf16>
    tpu.vector_store %arg19[%c2_49, %c0_50], %92 {strides = array<i32>} : memref<10x256xbf16, #tpu.memory_space<vmem>>, vector<8x128xbf16>,
    %c0_51 = arith.constant 0 : index
    %c0_52 = arith.constant 0 : index
    %95 = vector.load %arg19[%c0_51, %c0_52] : memref<10x256xbf16, #tpu.memory_space<vmem>>, vector<8x256xbf16>
    %c2_53 = arith.constant 2 : index
    %c0_54 = arith.constant 0 : index
    %96 = vector.load %arg19[%c2_53, %c0_54] : memref<10x256xbf16, #tpu.memory_space<vmem>>, vector<8x256xbf16>
    %c0_55 = arith.constant 0 : index
    %c0_56 = arith.constant 0 : index
    %97 = vector.load %arg6[%c0_55, %c0_56] : memref<256x128xbf16, #tpu.memory_space<vmem>>, vector<256x128xbf16>
    %cst_57 = arith.constant dense<0.000000e+00> : vector<8x128xf32>
    %98 = tpu.matmul %95, %97, %cst_57 {dimension_numbers = #tpu.dot_dimension_numbers<[1], [0], [0], [1], [0, 0, 1, 1], [], []>} : vector<8x256xbf16>, vector<256x128xbf16>, vector<8x128xf32> -> vector<8x128xf32>
    %c0_58 = arith.constant 0 : index
    %c0_59 = arith.constant 0 : index
    %99 = vector.load %arg7[%c0_58, %c0_59] : memref<256x128xbf16, #tpu.memory_space<vmem>>, vector<256x128xbf16>
    %cst_60 = arith.constant dense<0.000000e+00> : vector<8x128xf32>
    %100 = tpu.matmul %96, %99, %cst_60 {dimension_numbers = #tpu.dot_dimension_numbers<[1], [0], [0], [1], [0, 0, 1, 1], [], []>} : vector<8x256xbf16>, vector<256x128xbf16>, vector<8x128xf32> -> vector<8x128xf32>
    %101 = arith.addf %98, %100 : vector<8x128xf32>
    %cst_61 = arith.constant dense<0.000000e+00> : vector<128xf32>
    %102 = vector.multi_reduction <add>, %101, %cst_61 [0] : vector<8x128xf32> to vector<128xf32>
    %103 = vector.shape_cast %102 : vector<128xf32> to vector<1x128xf32>
    %104 = arith.mulf %101, %101 : vector<8x128xf32>
    %cst_62 = arith.constant dense<0.000000e+00> : vector<128xf32>
    %105 = vector.multi_reduction <add>, %104, %cst_62 [0] : vector<8x128xf32> to vector<128xf32>
    %106 = vector.shape_cast %105 : vector<128xf32> to vector<1x128xf32>
    %107 = tpu.concatenate %103, %106 in 0 : vector<1x128xf32>, vector<1x128xf32> -> vector<2x128xf32>
    %c0_63 = arith.constant 0 : index
    %c0_64 = arith.constant 0 : index
    %108 = vector.load %arg13[%c0_63, %c0_64] : memref<128x32xf32, #tpu.memory_space<vmem>>, vector<128x32xf32>
    %cst_65 = arith.constant dense<0.000000e+00> : vector<2x32xf32>
    %109 = tpu.matmul %107, %108, %cst_65 {dimension_numbers = #tpu.dot_dimension_numbers<[1], [0], [0], [1], [0, 0, 1, 1], [], []>} : vector<2x128xf32>, vector<128x32xf32>, vector<2x32xf32> -> vector<2x32xf32>
    %110 = vector.extract_strided_slice %109 {offsets = [0, 0], sizes = [1, 32], strides = [1, 1]} : vector<2x32xf32> to vector<1x32xf32>
    %111 = vector.extract_strided_slice %109 {offsets = [1, 0], sizes = [1, 32], strides = [1, 1]} : vector<2x32xf32> to vector<1x32xf32>
    %112 = arith.mulf %110, %110 : vector<1x32xf32>
    %113 = arith.subf %111, %112 : vector<1x32xf32>
    %cst_66 = arith.constant 9.99999974E-6 : f32
    %114 = vector.broadcast %cst_66 : f32 to vector<1x32xf32>
    %115 = arith.addf %113, %114 : vector<1x32xf32>
    %116 = math.rsqrt %115 : vector<1x32xf32>
    %c0_67 = arith.constant 0 : index
    %c0_68 = arith.constant 0 : index
    %117 = vector.load %arg15[%c0_67, %c0_68] : memref<1x32xf32, #tpu.memory_space<vmem>>, vector<1x32xf32>
    %118 = arith.mulf %116, %117 : vector<1x32xf32>
    %c0_69 = arith.constant 0 : index
    %c0_70 = arith.constant 0 : index
    %119 = vector.load %arg16[%c0_69, %c0_70] : memref<1x32xf32, #tpu.memory_space<vmem>>, vector<1x32xf32>
    %120 = arith.mulf %110, %118 : vector<1x32xf32>
    %121 = arith.subf %119, %120 : vector<1x32xf32>
    %122 = tpu.concatenate %118, %121 in 0 : vector<1x32xf32>, vector<1x32xf32> -> vector<2x32xf32>
    %c0_71 = arith.constant 0 : index
    %c0_72 = arith.constant 0 : index
    %123 = vector.load %arg14[%c0_71, %c0_72] : memref<32x128xf32, #tpu.memory_space<vmem>>, vector<32x128xf32>
    %cst_73 = arith.constant dense<0.000000e+00> : vector<2x128xf32>
    %124 = tpu.matmul %122, %123, %cst_73 {dimension_numbers = #tpu.dot_dimension_numbers<[1], [0], [0], [1], [0, 0, 1, 1], [], []>} : vector<2x32xf32>, vector<32x128xf32>, vector<2x128xf32> -> vector<2x128xf32>
    %125 = vector.extract_strided_slice %124 {offsets = [0, 0], sizes = [1, 128], strides = [1, 1]} : vector<2x128xf32> to vector<1x128xf32>
    %126 = vector.broadcast %125 : vector<1x128xf32> to vector<8x128xf32>
    %127 = arith.mulf %101, %126 : vector<8x128xf32>
    %128 = vector.extract_strided_slice %124 {offsets = [1, 0], sizes = [1, 128], strides = [1, 1]} : vector<2x128xf32> to vector<1x128xf32>
    %129 = vector.broadcast %128 : vector<1x128xf32> to vector<8x128xf32>
    %130 = arith.addf %127, %129 : vector<8x128xf32>
    %cst_74 = arith.constant 0.000000e+00 : f32
    %131 = vector.broadcast %cst_74 : f32 to vector<8x128xf32>
    %132 = arith.cmpf oge, %130, %131 : vector<8x128xf32>
    %cst_75 = arith.constant 2.000000e-01 : f32
    %133 = vector.broadcast %cst_75 : f32 to vector<8x128xf32>
    %134 = arith.mulf %133, %130 : vector<8x128xf32>
    %135 = arith.select %132, %130, %134 : vector<8x128xi1>, vector<8x128xf32>
    %136 = vector.extract_strided_slice %135 {offsets = [0, 0], sizes = [2, 128], strides = [1, 1]} : vector<8x128xf32> to vector<2x128xf32>
    %137 = vector.extract_strided_slice %135 {offsets = [2, 0], sizes = [2, 128], strides = [1, 1]} : vector<8x128xf32> to vector<2x128xf32>
    %138 = vector.extract_strided_slice %135 {offsets = [4, 0], sizes = [2, 128], strides = [1, 1]} : vector<8x128xf32> to vector<2x128xf32>
    %139 = vector.extract_strided_slice %135 {offsets = [6, 0], sizes = [2, 128], strides = [1, 1]} : vector<8x128xf32> to vector<2x128xf32>
    %140 = tpu.concatenate %136, %137, %138, %139 in 1 : vector<2x128xf32>, vector<2x128xf32>, vector<2x128xf32>, vector<2x128xf32> -> vector<2x512xf32>
    %141 = arith.truncf %140 : vector<2x512xf32> to vector<2x512xbf16>
    %c0_76 = arith.constant 0 : index
    %c0_77 = arith.constant 0 : index
    %142 = vector.load %arg8[%c0_76, %c0_77] : memref<512x1xbf16, #tpu.memory_space<vmem>>, vector<512x1xbf16>
    %cst_78 = arith.constant dense<0.000000e+00> : vector<2x1xf32>
    %143 = tpu.matmul %141, %142, %cst_78 {dimension_numbers = #tpu.dot_dimension_numbers<[1], [0], [0], [1], [0, 0, 1, 1], [], []>} : vector<2x512xbf16>, vector<512x1xbf16>, vector<2x1xf32> -> vector<2x1xf32>
    %cst_79 = arith.constant 0.000000e+00 : f32
    %144 = vector.broadcast %cst_79 : f32 to vector<2x1xf32>
    %145 = arith.subf %144, %143 : vector<2x1xf32>
    %146 = math.exp %145 : vector<2x1xf32>
    %cst_80 = arith.constant 1.000000e+00 : f32
    %147 = vector.broadcast %cst_80 : f32 to vector<2x1xf32>
    %148 = arith.addf %147, %146 : vector<2x1xf32>
    %cst_81 = arith.constant 1.000000e+00 : f32
    %149 = vector.broadcast %cst_81 : f32 to vector<2x1xf32>
    %150 = arith.divf %149, %148 : vector<2x1xf32>
    %c0_82 = arith.constant 0 : index
    %c0_83 = arith.constant 0 : index
    %151 = vector.load %arg17[%c0_82, %c0_83] : memref<2x1xf32, #tpu.memory_space<vmem>>, vector<2x1xf32>
    tpu.vector_store %arg17[%c0_82, %c0_83], %150 {strides = array<i32>} : memref<2x1xf32, #tpu.memory_space<vmem>>, vector<2x1xf32>,
    return
  }
  func.func @transform_0(%arg0: i32) -> (i32, i32) {
    %c0_i32 = arith.constant 0 : i32
    %c0_i32_0 = arith.constant 0 : i32
    %c0_i32_1 = arith.constant 0 : i32
    return %c0_i32, %c0_i32_0 : i32, i32
  }
  func.func @transform_1(%arg0: i32) -> (i32, i32) {
    %c0_i32 = arith.constant 0 : i32
    %c0_i32_0 = arith.constant 0 : i32
    %c0_i32_1 = arith.constant 0 : i32
    return %c0_i32, %c0_i32_0 : i32, i32
  }
  func.func @transform_2(%arg0: i32) -> (i32, i32) {
    %c0_i32 = arith.constant 0 : i32
    %c0_i32_0 = arith.constant 0 : i32
    %c0_i32_1 = arith.constant 0 : i32
    return %c0_i32, %c0_i32_0 : i32, i32
  }
  func.func @transform_3(%arg0: i32) -> (i32, i32) {
    %c0_i32 = arith.constant 0 : i32
    %c0_i32_0 = arith.constant 0 : i32
    %c0_i32_1 = arith.constant 0 : i32
    return %c0_i32, %c0_i32_0 : i32, i32
  }
  func.func @transform_4(%arg0: i32) -> (i32, i32) {
    %c0_i32 = arith.constant 0 : i32
    %c0_i32_0 = arith.constant 0 : i32
    %c0_i32_1 = arith.constant 0 : i32
    return %c0_i32, %c0_i32_0 : i32, i32
  }
  func.func @transform_5(%arg0: i32) -> (i32, i32) {
    %c0_i32 = arith.constant 0 : i32
    %c0_i32_0 = arith.constant 0 : i32
    %c0_i32_1 = arith.constant 0 : i32
    return %c0_i32, %c0_i32_0 : i32, i32
  }
  func.func @transform_6(%arg0: i32) -> (i32, i32) {
    %c0_i32 = arith.constant 0 : i32
    %c0_i32_0 = arith.constant 0 : i32
    %c0_i32_1 = arith.constant 0 : i32
    return %c0_i32, %c0_i32_0 : i32, i32
  }
  func.func @transform_7(%arg0: i32) -> (i32, i32) {
    %c0_i32 = arith.constant 0 : i32
    %c0_i32_0 = arith.constant 0 : i32
    %c0_i32_1 = arith.constant 0 : i32
    return %c0_i32, %c0_i32_0 : i32, i32
  }
  func.func @transform_8(%arg0: i32) -> (i32, i32) {
    %c0_i32 = arith.constant 0 : i32
    %c0_i32_0 = arith.constant 0 : i32
    %c0_i32_1 = arith.constant 0 : i32
    return %c0_i32, %c0_i32_0 : i32, i32
  }
  func.func @transform_9(%arg0: i32) -> (i32, i32) {
    %c0_i32 = arith.constant 0 : i32
    %c0_i32_0 = arith.constant 0 : i32
    %c0_i32_1 = arith.constant 0 : i32
    return %c0_i32, %c0_i32_0 : i32, i32
  }
  func.func @transform_10(%arg0: i32) -> (i32, i32) {
    %c0_i32 = arith.constant 0 : i32
    %c0_i32_0 = arith.constant 0 : i32
    %c0_i32_1 = arith.constant 0 : i32
    return %c0_i32, %c0_i32_0 : i32, i32
  }
  func.func @transform_11(%arg0: i32) -> (i32, i32) {
    %c0_i32 = arith.constant 0 : i32
    %c0_i32_0 = arith.constant 0 : i32
    %c0_i32_1 = arith.constant 0 : i32
    return %c0_i32, %c0_i32_0 : i32, i32
  }
  func.func @transform_12(%arg0: i32) -> (i32, i32) {
    %c0_i32 = arith.constant 0 : i32
    %c0_i32_0 = arith.constant 0 : i32
    %c0_i32_1 = arith.constant 0 : i32
    return %c0_i32, %c0_i32_0 : i32, i32
  }
  func.func @transform_13(%arg0: i32) -> (i32, i32) {
    %c0_i32 = arith.constant 0 : i32
    %c0_i32_0 = arith.constant 0 : i32
    %c0_i32_1 = arith.constant 0 : i32
    return %c0_i32, %c0_i32_0 : i32, i32
  }
  func.func @transform_14(%arg0: i32) -> (i32, i32) {
    %c0_i32 = arith.constant 0 : i32
    %c0_i32_0 = arith.constant 0 : i32
    %c0_i32_1 = arith.constant 0 : i32
    return %c0_i32, %c0_i32_0 : i32, i32
  }
  func.func @transform_15(%arg0: i32) -> (i32, i32) {
    %c0_i32 = arith.constant 0 : i32
    %c0_i32_0 = arith.constant 0 : i32
    %c0_i32_1 = arith.constant 0 : i32
    return %c0_i32, %c0_i32_0 : i32, i32
  }
  func.func @transform_16(%arg0: i32) -> (i32, i32) {
    %c0_i32 = arith.constant 0 : i32
    %c0_i32_0 = arith.constant 0 : i32
    %c0_i32_1 = arith.constant 0 : i32
    return %c0_i32, %c0_i32_0 : i32, i32
  }
}

</mosaic_0001>

<llo_original>
// kernel: forward.1
$region0: #{forward.1}
  #allocation0 [shape = 'u32[]', space=smem, size = 0x4, offset = 0x4, fixed_abs, tag = 'smem constant byte address 0x4 - core index']
  #allocation1 [shape = 'u32[144,128]{1,0:T(1,128)}', space=vmem, size = 0x12000, scoped, tag = 'internal scratch']
  #allocation2 [shape = 'bf16[18,256]{1,0:T(8,128)(2,1)}', space=vmem, size = 0x3000, scoped, tag = 'scratch operand']
  #allocation3 [shape = 'bf16[10,256]{1,0:T(8,128)(2,1)}', space=vmem, size = 0x2000, scoped, tag = 'scratch operand']
  %s0 = inlined_call_operand.vmem [shape: bf16[34,64], index: 0, kind: input, shape index: {}]
  %s1 = inlined_call_operand.vmem [shape: bf16[64,128], index: 1, kind: input, shape index: {}]
  %s2 = inlined_call_operand.vmem [shape: bf16[64,128], index: 2, kind: input, shape index: {}]
  %s3 = inlined_call_operand.vmem [shape: bf16[256,128], index: 3, kind: input, shape index: {}]
  %s4 = inlined_call_operand.vmem [shape: bf16[256,128], index: 4, kind: input, shape index: {}]
  %s5 = inlined_call_operand.vmem [shape: bf16[256,128], index: 5, kind: input, shape index: {}]
  %s6 = inlined_call_operand.vmem [shape: bf16[256,128], index: 6, kind: input, shape index: {}]
  %s7 = inlined_call_operand.vmem [shape: bf16[512,1], index: 7, kind: input, shape index: {}]
  %s8 = inlined_call_operand.vmem [shape: f32[128,16], index: 8, kind: input, shape index: {}]
  %s9 = inlined_call_operand.vmem [shape: f32[16,128], index: 9, kind: input, shape index: {}]
  %s10 = inlined_call_operand.vmem [shape: f32[1,16], index: 10, kind: input, shape index: {}]
  %s11 = inlined_call_operand.vmem [shape: f32[1,16], index: 11, kind: input, shape index: {}]
  %s12 = inlined_call_operand.vmem [shape: f32[128,32], index: 12, kind: input, shape index: {}]
  %s13 = inlined_call_operand.vmem [shape: f32[32,128], index: 13, kind: input, shape index: {}]
  %s14 = inlined_call_operand.vmem [shape: f32[1,32], index: 14, kind: input, shape index: {}]
  %s15 = inlined_call_operand.vmem [shape: f32[1,32], index: 15, kind: input, shape index: {}]
  %s16 = inlined_call_operand.vmem [shape: f32[2,1], index: 16, kind: output, shape index: {}]
  %s17 = sld [smem:[#allocation0]]
  $region74: #{forward.1} parent=0
    _
  %s19 = ssub.s32 1, %s17
  %s20 = scalar_select 0, %s19, %s17
  // Predicated region
  $region2: #{forward.1} parent=0 // pred_check
    _
  $region3: #{forward.1} parent=0 // pred_check_branch
    %22 = sbr.rel (0) target = $region5
  $region4: #{forward.1} parent=0 // pred_region
    _
  $region5: #{forward.1} parent=0 // pred_fallthru
    _
  // Predicated region
  $region6: #{forward.1} parent=0 // pred_check
    _
  $region7: #{forward.1} parent=0 // pred_check_branch
    %24 = sbr.rel (0) target = $region9
  $region8: #{forward.1} parent=0 // pred_region
    _
  $region9: #{forward.1} parent=0 // pred_fallthru
    _
  // Predicated region
  $region10: #{forward.1} parent=0 // pred_check
    _
  $region11: #{forward.1} parent=0 // pred_check_branch
    %26 = sbr.rel (0) target = $region13
  $region12: #{forward.1} parent=0 // pred_region
    _
  $region13: #{forward.1} parent=0 // pred_fallthru
    _
  // Predicated region
  $region14: #{forward.1} parent=0 // pred_check
    _
  $region15: #{forward.1} parent=0 // pred_check_branch
    %28 = sbr.rel (0) target = $region17
  $region16: #{forward.1} parent=0 // pred_region
    _
  $region17: #{forward.1} parent=0 // pred_fallthru
    _
  // Predicated region
  $region18: #{forward.1} parent=0 // pred_check
    _
  $region19: #{forward.1} parent=0 // pred_check_branch
    %30 = sbr.rel (0) target = $region21
  $region20: #{forward.1} parent=0 // pred_region
    _
  $region21: #{forward.1} parent=0 // pred_fallthru
    _
  // Predicated region
  $region22: #{forward.1} parent=0 // pred_check
    _
  $region23: #{forward.1} parent=0 // pred_check_branch
    %32 = sbr.rel (0) target = $region25
  $region24: #{forward.1} parent=0 // pred_region
    _
  $region25: #{forward.1} parent=0 // pred_fallthru
    _
  // Predicated region
  $region26: #{forward.1} parent=0 // pred_check
    _
  $region27: #{forward.1} parent=0 // pred_check_branch
    %34 = sbr.rel (0) target = $region29
  $region28: #{forward.1} parent=0 // pred_region
    _
  $region29: #{forward.1} parent=0 // pred_fallthru
    _
  // Predicated region
  $region30: #{forward.1} parent=0 // pred_check
    _
  $region31: #{forward.1} parent=0 // pred_check_branch
    %36 = sbr.rel (0) target = $region33
  $region32: #{forward.1} parent=0 // pred_region
    _
  $region33: #{forward.1} parent=0 // pred_fallthru
    _
  // Predicated region
  $region34: #{forward.1} parent=0 // pred_check
    _
  $region35: #{forward.1} parent=0 // pred_check_branch
    %38 = sbr.rel (0) target = $region37
  $region36: #{forward.1} parent=0 // pred_region
    _
  $region37: #{forward.1} parent=0 // pred_fallthru
    _
  // Predicated region
  $region38: #{forward.1} parent=0 // pred_check
    _
  $region39: #{forward.1} parent=0 // pred_check_branch
    %40 = sbr.rel (0) target = $region41
  $region40: #{forward.1} parent=0 // pred_region
    _
  $region41: #{forward.1} parent=0 // pred_fallthru
    _
  // Predicated region
  $region42: #{forward.1} parent=0 // pred_check
    _
  $region43: #{forward.1} parent=0 // pred_check_branch
    %42 = sbr.rel (0) target = $region45
  $region44: #{forward.1} parent=0 // pred_region
    _
  $region45: #{forward.1} parent=0 // pred_fallthru
    _
  // Predicated region
  $region46: #{forward.1} parent=0 // pred_check
    _
  $region47: #{forward.1} parent=0 // pred_check_branch
    %44 = sbr.rel (0) target = $region49
  $region48: #{forward.1} parent=0 // pred_region
    _
  $region49: #{forward.1} parent=0 // pred_fallthru
    _
  // Predicated region
  $region50: #{forward.1} parent=0 // pred_check
    _
  $region51: #{forward.1} parent=0 // pred_check_branch
    %46 = sbr.rel (0) target = $region53
  $region52: #{forward.1} parent=0 // pred_region
    _
  $region53: #{forward.1} parent=0 // pred_fallthru
    _
  // Predicated region
  $region54: #{forward.1} parent=0 // pred_check
    _
  $region55: #{forward.1} parent=0 // pred_check_branch
    %48 = sbr.rel (0) target = $region57
  $region56: #{forward.1} parent=0 // pred_region
    _
  $region57: #{forward.1} parent=0 // pred_fallthru
    _
  // Predicated region
  $region58: #{forward.1} parent=0 // pred_check
    _
  $region59: #{forward.1} parent=0 // pred_check_branch
    %50 = sbr.rel (0) target = $region61
  $region60: #{forward.1} parent=0 // pred_region
    _
  $region61: #{forward.1} parent=0 // pred_fallthru
    _
  // Predicated region
  $region62: #{forward.1} parent=0 // pred_check
    _
  $region63: #{forward.1} parent=0 // pred_check_branch
    %52 = sbr.rel (0) target = $region65
  $region64: #{forward.1} parent=0 // pred_region
    _
  $region65: #{forward.1} parent=0 // pred_fallthru
    _
  %54 = vst [vmem:[#allocation2] sm:$0x1] 0
  %55 = vst [vmem:[#allocation2 + $0x14] sm:$0x1] 0
  %56 = vst [vmem:[#allocation3] sm:$0x1] 0
  %57 = vst [vmem:[#allocation3 + $0xc] sm:$0x1] 0
  %v58 = vld [vmem:[%s0] sm:$0xf]
  %v59 = vld [vmem:[%s0 + $0x4] sm:$0xf]
  %v60 = vld [vmem:[%s0 + $0x8] sm:$0xf]
  %v61 = vld [vmem:[%s0 + $0xc] sm:$0xf]
  %v62 = vld [vmem:[%s0] sm:$0xe]
  %v63 = vld [vmem:[%s0 + $0x10] sm:$0x1]
  %v64 = vld [vmem:[%s1] sm:$0xf]
  %v65 = vld [vmem:[%s1 + $0x4] sm:$0xf]
  %v66 = vld [vmem:[%s1 + $0x8] sm:$0xf]
  %v67 = vld [vmem:[%s1 + $0xc] sm:$0xf]
  %v68 = vld [vmem:[%s1 + $0x10] sm:$0xf]
  %v69 = vld [vmem:[%s1 + $0x14] sm:$0xf]
  %v70 = vld [vmem:[%s1 + $0x18] sm:$0xf]
  %v71 = vld [vmem:[%s1 + $0x1c] sm:$0xf]
  %v72 = vld [vmem:[%s2] sm:$0xf]
  %v73 = vld [vmem:[%s2 + $0x4] sm:$0xf]
  %v74 = vld [vmem:[%s2 + $0x8] sm:$0xf]
  %v75 = vld [vmem:[%s2 + $0xc] sm:$0xf]
  %v76 = vld [vmem:[%s2 + $0x10] sm:$0xf]
  %v77 = vld [vmem:[%s2 + $0x14] sm:$0xf]
  %v78 = vld [vmem:[%s2 + $0x18] sm:$0xf]
  %v79 = vld [vmem:[%s2 + $0x1c] sm:$0xf]
  %v85 = vunpack.c.l.b16 %v62
  %v86 = vunpack.c.l.b16 %v59
  %v87 = vunpack.c.l.b16 %v60
  %v88 = vunpack.c.l.b16 %v61
  %v89 = vunpack.c.l.b16 %v63
  %v90 = vpack.c.b16 %v86, %v85
  %v91 = vpack.c.b16 %v88, %v87
  %v92 = vpack.c.b16 %v89, %v89
  %vm93 = vcmask 1046528
  %v94 = vrot.slane %v90, 1
  %v95 = vrot.slane %v91, 1
  %v96 = vsel %vm93, %v94, %v95
  %v97 = vrot.slane %v92, 1
  %v98 = vsel %vm93, %v95, %v97
  %v107 = vunpack.c.l.b16 %v72
  %v108 = vunpack.c.l.b16 %v73
  %v109 = vunpack.c.l.b16 %v74
  %v110 = vunpack.c.l.b16 %v75
  %v111 = vunpack.c.l.b16 %v76
  %v112 = vunpack.c.l.b16 %v77
  %v113 = vunpack.c.l.b16 %v78
  %v114 = vunpack.c.l.b16 %v79
  %v115 = vpack.c.b16 %v108, %v107
  %v116 = vpack.c.b16 %v110, %v109
  %v117 = vpack.c.b16 %v112, %v111
  %v118 = vpack.c.b16 %v114, %v113
  %vm123 = vcmask 523264
  %v125 = vsel %vm123, %v96, 0
  %v128 = vsel %vm123, %v98, 0
  %130 = vmatprep.subr.bf16.mxu0 0
  %131 = vmatpush1.bf16.msra.mxu0 0
  %132 = vmatprep.subr.bf16.mxu0 0
  %133 = vmatpush1.bf16.msra.mxu0 0
  %134 = vmatprep.subr.bf16.mxu0 0
  %135 = vmatpush1.bf16.msra.mxu0 0
  %136 = vmatprep.subr.bf16.mxu0 0
  %137 = vmatpush1.bf16.msra.mxu0 0
  %138 = vmatprep.subr.bf16.mxu0 0
  %139 = vmatpush1.bf16.msra.mxu0 %v118
  %140 = vmatprep.subr.bf16.mxu0 0
  %141 = vmatpush1.bf16.msra.mxu0 %v117
  %142 = vmatprep.subr.bf16.mxu0 0
  %143 = vmatpush1.bf16.msra.mxu0 %v116
  %144 = vmatprep.subr.bf16.mxu0 0
  %145 = vmatpush1.bf16.msra.mxu0 %v115
  %146 = vmatprep.subr.bf16.mxu0 0
  %147 = vmatpush2.bf16.msra.mxu0 0
  %148 = vmatprep.subr.bf16.mxu0 0
  %149 = vmatpush2.bf16.msra.mxu0 0
  %150 = vmatprep.subr.bf16.mxu0 0
  %151 = vmatpush2.bf16.msra.mxu0 0
  %152 = vmatprep.subr.bf16.mxu0 0
  %153 = vmatpush2.bf16.msra.mxu0 0
  %154 = vmatprep.subr.bf16.mxu0 0
  %155 = vmatpush2.bf16.msra.mxu0 0
  %156 = vmatprep.subr.bf16.mxu0 0
  %157 = vmatpush2.bf16.msra.mxu0 0
  %158 = vmatprep.subr.bf16.mxu0 0
  %159 = vmatpush2.bf16.msra.mxu0 0
  %160 = vmatprep.subr.bf16.mxu0 0
  %161 = vmatpush2.bf16.msra.mxu0 0
  %162 = vmatprep.mubr.bf16.mxu0 0
  %163 = vmatmul.mubr.bf16.gmra.mxu0 %v125
  %v164 = vpop.f32.mrf.mxu0
  %v165 = vadd.f32 0.0, %v164
  %v166 = vpop.f32.mrf.mxu0
  %v167 = vpop.f32.mrf.mxu0
  %v168 = vadd.f32 0.0, %v167
  %v169 = vpop.f32.mrf.mxu0
  %170 = vmatprep.mubr.bf16.mxu0 0
  %171 = vmatmul.mubr.bf16.gmra.mxu0 %v128
  %v172 = vpop.f32.mrf.mxu0
  %v173 = vadd.f32 0.0, %v172
  %v174 = vpop.f32.mrf.mxu0
  %v175 = vpop.f32.mrf.mxu0
  %v176 = vadd.f32 0.0, %v175
  %v177 = vpop.f32.mrf.mxu0
  %178 = vdwg.mxu0
  %v180 = vunpack.c.l.b16 %v58
  %v181 = vpack.c.b16 %v86, %v180
  %v190 = vunpack.c.l.b16 %v64
  %v191 = vunpack.c.l.b16 %v65
  %v192 = vunpack.c.l.b16 %v66
  %v193 = vunpack.c.l.b16 %v67
  %v194 = vunpack.c.l.b16 %v68
  %v195 = vunpack.c.l.b16 %v69
  %v196 = vunpack.c.l.b16 %v70
  %v197 = vunpack.c.l.b16 %v71
  %v198 = vpack.c.b16 %v191, %v190
  %v199 = vpack.c.b16 %v193, %v192
  %v200 = vpack.c.b16 %v195, %v194
  %v201 = vpack.c.b16 %v197, %v196
  %v207 = vsel %vm123, %v181, 0
  %v210 = vsel %vm123, %v91, 0
  %212 = vmatprep.subr.bf16.mxu0 0
  %213 = vmatpush1.bf16.msra.mxu0 0
  %214 = vmatprep.subr.bf16.mxu0 0
  %215 = vmatpush1.bf16.msra.mxu0 0
  %216 = vmatprep.subr.bf16.mxu0 0
  %217 = vmatpush1.bf16.msra.mxu0 0
  %218 = vmatprep.subr.bf16.mxu0 0
  %219 = vmatpush1.bf16.msra.mxu0 0
  %220 = vmatprep.subr.bf16.mxu0 0
  %221 = vmatpush1.bf16.msra.mxu0 %v201
  %222 = vmatprep.subr.bf16.mxu0 0
  %223 = vmatpush1.bf16.msra.mxu0 %v200
  %224 = vmatprep.subr.bf16.mxu0 0
  %225 = vmatpush1.bf16.msra.mxu0 %v199
  %226 = vmatprep.subr.bf16.mxu0 0
  %227 = vmatpush1.bf16.msra.mxu0 %v198
  %228 = vmatprep.subr.bf16.mxu0 0
  %229 = vmatpush2.bf16.msra.mxu0 0
  %230 = vmatprep.subr.bf16.mxu0 0
  %231 = vmatpush2.bf16.msra.mxu0 0
  %232 = vmatprep.subr.bf16.mxu0 0
  %233 = vmatpush2.bf16.msra.mxu0 0
  %234 = vmatprep.subr.bf16.mxu0 0
  %235 = vmatpush2.bf16.msra.mxu0 0
  %236 = vmatprep.subr.bf16.mxu0 0
  %237 = vmatpush2.bf16.msra.mxu0 0
  %238 = vmatprep.subr.bf16.mxu0 0
  %239 = vmatpush2.bf16.msra.mxu0 0
  %240 = vmatprep.subr.bf16.mxu0 0
  %241 = vmatpush2.bf16.msra.mxu0 0
  %242 = vmatprep.subr.bf16.mxu0 0
  %243 = vmatpush2.bf16.msra.mxu0 0
  %244 = vmatprep.mubr.bf16.mxu0 0
  %245 = vmatmul.mubr.bf16.gmra.mxu0 %v207
  %v246 = vpop.f32.mrf.mxu0
  %v247 = vadd.f32 %v165, %v246
  %v248 = vpop.f32.mrf.mxu0
  %v249 = vpop.f32.mrf.mxu0
  %v250 = vadd.f32 %v168, %v249
  %v251 = vpop.f32.mrf.mxu0
  %252 = vmatprep.mubr.bf16.mxu0 0
  %253 = vmatmul.mubr.bf16.gmra.mxu0 %v210
  %v254 = vpop.f32.mrf.mxu0
  %v255 = vadd.f32 %v173, %v254
  %v256 = vpop.f32.mrf.mxu0
  %v257 = vpop.f32.mrf.mxu0
  %v258 = vadd.f32 %v176, %v257
  %v259 = vpop.f32.mrf.mxu0
  %260 = vdwg.mxu0
  %vm261 = vcmp.ge.f32.partialorder %v247, 0.0
  %vm262 = vcmp.ge.f32.partialorder %v250, 0.0
  %vm263 = vcmp.ge.f32.partialorder %v255, 0.0
  %vm264 = vcmp.ge.f32.partialorder %v258, 0.0
  %v265 = vmul.f32 %v247, 0.2
  %v266 = vmul.f32 %v250, 0.2
  %v267 = vmul.f32 %v255, 0.2
  %v268 = vmul.f32 %v258, 0.2
  %v269 = vsel %vm261, %v247, %v265
  %v270 = vsel %vm262, %v250, %v266
  %v271 = vsel %vm263, %v255, %v267
  %v272 = vsel %vm264, %v258, %v268
  %v273 = vpack.c.bf16 %v270, %v269
  %v274 = vpack.c.bf16 %v272, %v271
  %v276 = vrot.slane %v273, 1
  %v277 = vrot.slane %v273, 2
  %v278 = vrot.slane %v273, 3
  %v280 = vrot.slane %v274, 4
  %v281 = vrot.slane %v274, 5
  %v282 = vrot.slane %v274, 6
  %v283 = vrot.slane %v274, 7
  %vm284 = vcmask 1040384
  %v287 = vsel %vm284, %v273, %v276
  %vm288 = vcmask 1041408
  %v290 = vsel %vm288, %v287, %v277
  %vm291 = vcmask 1042432
  %v293 = vsel %vm291, %v290, %v278
  %vm294 = vcmask 1043456
  %v296 = vsel %vm294, %v293, %v280
  %vm297 = vcmask 1044480
  %v299 = vsel %vm297, %v296, %v281
  %vm300 = vcmask 1045504
  %v302 = vsel %vm300, %v299, %v282
  %vm303 = vcmask 1046528
  %v305 = vsel %vm303, %v302, %v283
  %v306 = vrot.slane %v273, 4
  %v307 = vsel %vm284, %v276, %v277
  %v308 = vsel %vm288, %v307, %v278
  %v310 = vsel %vm291, %v308, %v306
  %v311 = vsel %vm294, %v310, %v281
  %v312 = vsel %vm297, %v311, %v282
  %v313 = vsel %vm300, %v312, %v283
  %v315 = vsel %vm303, %v313, %v274
  %v317 = vunpack.c.l.b16 %v305
  %v318 = vunpack.c.h.b16 %v305
  %v319 = vpack.c.b16 %v317, %v317
  %v320 = vpack.c.b16 %v318, %v318
  %323 = vst [vmem:[#allocation2 + $0x4] sm:$0xf] %v319
  %324 = vst [vmem:[#allocation2 + $0xc] sm:$0xf] %v320
  %v326 = vunpack.c.l.b16 %v315
  %v327 = vunpack.c.h.b16 %v315
  %v328 = vpack.c.b16 %v326, %v326
  %v329 = vpack.c.b16 %v327, %v327
  %vm330 = vcmask 1040384
  %vm331 = vcmask 1044484
  %vm332 = vmor %vm330, %vm331
  %v333 = vrot.slane %v328, 7
  %v334 = vrot.slane %v333, 4
  %v335 = vrot.slane %v329, 7
  %v336 = vsel %vm332, %v334, %v335
  %v337 = vrot.slane %v335, 4
  %341 = vst [vmem:[#allocation2] sm:$0xe] %v333
  %342 = vst [vmem:[#allocation2 + $0x8] sm:$0xf] %v336
  %343 = vst [vmem:[#allocation2 + $0x10] sm:$0x1] %v337
  %v344 = vld [vmem:[#allocation2] sm:$0xff]
  %v345 = vld [vmem:[#allocation2 + $0x8] sm:$0xff]
  %v346 = vld [vmem:[#allocation2] sm:$0xee]
  %v347 = vld [vmem:[#allocation2 + $0x10] sm:$0x11]
  %v348 = vld [vmem:[%s3] sm:$0xf]
  %v349 = vld [vmem:[%s3 + $0x4] sm:$0xf]
  %v350 = vld [vmem:[%s3 + $0x8] sm:$0xf]
  %v351 = vld [vmem:[%s3 + $0xc] sm:$0xf]
  %v352 = vld [vmem:[%s3 + $0x10] sm:$0xf]
  %v353 = vld [vmem:[%s3 + $0x14] sm:$0xf]
  %v354 = vld [vmem:[%s3 + $0x18] sm:$0xf]
  %v355 = vld [vmem:[%s3 + $0x1c] sm:$0xf]
  %v356 = vld [vmem:[%s3 + $0x20] sm:$0xf]
  %v357 = vld [vmem:[%s3 + $0x24] sm:$0xf]
  %v358 = vld [vmem:[%s3 + $0x28] sm:$0xf]
  %v359 = vld [vmem:[%s3 + $0x2c] sm:$0xf]
  %v360 = vld [vmem:[%s3 + $0x30] sm:$0xf]
  %v361 = vld [vmem:[%s3 + $0x34] sm:$0xf]
  %v362 = vld [vmem:[%s3 + $0x38] sm:$0xf]
  %v363 = vld [vmem:[%s3 + $0x3c] sm:$0xf]
  %v364 = vld [vmem:[%s3 + $0x40] sm:$0xf]
  %v365 = vld [vmem:[%s3 + $0x44] sm:$0xf]
  %v366 = vld [vmem:[%s3 + $0x48] sm:$0xf]
  %v367 = vld [vmem:[%s3 + $0x4c] sm:$0xf]
  %v368 = vld [vmem:[%s3 + $0x50] sm:$0xf]
  %v369 = vld [vmem:[%s3 + $0x54] sm:$0xf]
  %v370 = vld [vmem:[%s3 + $0x58] sm:$0xf]
  %v371 = vld [vmem:[%s3 + $0x5c] sm:$0xf]
  %v372 = vld [vmem:[%s3 + $0x60] sm:$0xf]
  %v373 = vld [vmem:[%s3 + $0x64] sm:$0xf]
  %v374 = vld [vmem:[%s3 + $0x68] sm:$0xf]
  %v375 = vld [vmem:[%s3 + $0x6c] sm:$0xf]
  %v376 = vld [vmem:[%s3 + $0x70] sm:$0xf]
  %v377 = vld [vmem:[%s3 + $0x74] sm:$0xf]
  %v378 = vld [vmem:[%s3 + $0x78] sm:$0xf]
  %v379 = vld [vmem:[%s3 + $0x7c] sm:$0xf]
  %v380 = vld [vmem:[%s4] sm:$0xf]
  %v381 = vld [vmem:[%s4 + $0x4] sm:$0xf]
  %v382 = vld [vmem:[%s4 + $0x8] sm:$0xf]
  %v383 = vld [vmem:[%s4 + $0xc] sm:$0xf]
  %v384 = vld [vmem:[%s4 + $0x10] sm:$0xf]
  %v385 = vld [vmem:[%s4 + $0x14] sm:$0xf]
  %v386 = vld [vmem:[%s4 + $0x18] sm:$0xf]
  %v387 = vld [vmem:[%s4 + $0x1c] sm:$0xf]
  %v388 = vld [vmem:[%s4 + $0x20] sm:$0xf]
  %v389 = vld [vmem:[%s4 + $0x24] sm:$0xf]
  %v390 = vld [vmem:[%s4 + $0x28] sm:$0xf]
  %v391 = vld [vmem:[%s4 + $0x2c] sm:$0xf]
  %v392 = vld [vmem:[%s4 + $0x30] sm:$0xf]
  %v393 = vld [vmem:[%s4 + $0x34] sm:$0xf]
  %v394 = vld [vmem:[%s4 + $0x38] sm:$0xf]
  %v395 = vld [vmem:[%s4 + $0x3c] sm:$0xf]
  %v396 = vld [vmem:[%s4 + $0x40] sm:$0xf]
  %v397 = vld [vmem:[%s4 + $0x44] sm:$0xf]
  %v398 = vld [vmem:[%s4 + $0x48] sm:$0xf]
  %v399 = vld [vmem:[%s4 + $0x4c] sm:$0xf]
  %v400 = vld [vmem:[%s4 + $0x50] sm:$0xf]
  %v401 = vld [vmem:[%s4 + $0x54] sm:$0xf]
  %v402 = vld [vmem:[%s4 + $0x58] sm:$0xf]
  %v403 = vld [vmem:[%s4 + $0x5c] sm:$0xf]
  %v404 = vld [vmem:[%s4 + $0x60] sm:$0xf]
  %v405 = vld [vmem:[%s4 + $0x64] sm:$0xf]
  %v406 = vld [vmem:[%s4 + $0x68] sm:$0xf]
  %v407 = vld [vmem:[%s4 + $0x6c] sm:$0xf]
  %v408 = vld [vmem:[%s4 + $0x70] sm:$0xf]
  %v409 = vld [vmem:[%s4 + $0x74] sm:$0xf]
  %v410 = vld [vmem:[%s4 + $0x78] sm:$0xf]
  %v411 = vld [vmem:[%s4 + $0x7c] sm:$0xf]
  %v415 = vunpack.c.l.b16 %v346
  %v416 = vunpack.c.h.b16 %v346
  %v417 = vunpack.c.l.b16 %v345
  %v418 = vunpack.c.h.b16 %v345
  %v419 = vunpack.c.l.b16 %v347
  %v420 = vunpack.c.h.b16 %v347
  %v421 = vpack.c.b16 %v417, %v415
  %v422 = vpack.c.b16 %v418, %v416
  %v423 = vpack.c.b16 %v419, %v419
  %v424 = vpack.c.b16 %v420, %v420
  %v425 = vrot.slane %v421, 1
  %v426 = vrot.slane %v423, 1
  %v427 = vsel %vm93, %v425, %v426
  %v428 = vrot.slane %v422, 1
  %v429 = vrot.slane %v424, 1
  %v430 = vsel %vm93, %v428, %v429
  %v465 = vunpack.c.l.b16 %v380
  %v466 = vunpack.c.l.b16 %v381
  %v467 = vunpack.c.l.b16 %v382
  %v468 = vunpack.c.l.b16 %v383
  %v469 = vunpack.c.l.b16 %v384
  %v470 = vunpack.c.l.b16 %v385
  %v471 = vunpack.c.l.b16 %v386
  %v472 = vunpack.c.l.b16 %v387
  %v473 = vunpack.c.l.b16 %v388
  %v474 = vunpack.c.l.b16 %v389
  %v475 = vunpack.c.l.b16 %v390
  %v476 = vunpack.c.l.b16 %v391
  %v477 = vunpack.c.l.b16 %v392
  %v478 = vunpack.c.l.b16 %v393
  %v479 = vunpack.c.l.b16 %v394
  %v480 = vunpack.c.l.b16 %v395
  %v481 = vunpack.c.l.b16 %v396
  %v482 = vunpack.c.l.b16 %v397
  %v483 = vunpack.c.l.b16 %v398
  %v484 = vunpack.c.l.b16 %v399
  %v485 = vunpack.c.l.b16 %v400
  %v486 = vunpack.c.l.b16 %v401
  %v487 = vunpack.c.l.b16 %v402
  %v488 = vunpack.c.l.b16 %v403
  %v489 = vunpack.c.l.b16 %v404
  %v490 = vunpack.c.l.b16 %v405
  %v491 = vunpack.c.l.b16 %v406
  %v492 = vunpack.c.l.b16 %v407
  %v493 = vunpack.c.l.b16 %v408
  %v494 = vunpack.c.l.b16 %v409
  %v495 = vunpack.c.l.b16 %v410
  %v496 = vunpack.c.l.b16 %v411
  %v497 = vpack.c.b16 %v466, %v465
  %v498 = vpack.c.b16 %v468, %v467
  %v499 = vpack.c.b16 %v470, %v469
  %v500 = vpack.c.b16 %v472, %v471
  %v501 = vpack.c.b16 %v474, %v473
  %v502 = vpack.c.b16 %v476, %v475
  %v503 = vpack.c.b16 %v478, %v477
  %v504 = vpack.c.b16 %v480, %v479
  %v505 = vpack.c.b16 %v482, %v481
  %v506 = vpack.c.b16 %v484, %v483
  %v507 = vpack.c.b16 %v486, %v485
  %v508 = vpack.c.b16 %v488, %v487
  %v509 = vpack.c.b16 %v490, %v489
  %v510 = vpack.c.b16 %v492, %v491
  %v511 = vpack.c.b16 %v494, %v493
  %v512 = vpack.c.b16 %v496, %v495
  %529 = vmatprep.subr.bf16.mxu0 0
  %530 = vmatpush1.bf16.msra.mxu0 %v504
  %531 = vmatprep.subr.bf16.mxu0 0
  %532 = vmatpush1.bf16.msra.mxu0 %v503
  %533 = vmatprep.subr.bf16.mxu0 0
  %534 = vmatpush1.bf16.msra.mxu0 %v502
  %535 = vmatprep.subr.bf16.mxu0 0
  %536 = vmatpush1.bf16.msra.mxu0 %v501
  %537 = vmatprep.subr.bf16.mxu0 0
  %538 = vmatpush1.bf16.msra.mxu0 %v500
  %539 = vmatprep.subr.bf16.mxu0 0
  %540 = vmatpush1.bf16.msra.mxu0 %v499
  %541 = vmatprep.subr.bf16.mxu0 0
  %542 = vmatpush1.bf16.msra.mxu0 %v498
  %543 = vmatprep.subr.bf16.mxu0 0
  %544 = vmatpush1.bf16.msra.mxu0 %v497
  %545 = vmatprep.subr.bf16.mxu0 0
  %546 = vmatpush2.bf16.msra.mxu0 %v512
  %547 = vmatprep.subr.bf16.mxu0 0
  %548 = vmatpush2.bf16.msra.mxu0 %v511
  %549 = vmatprep.subr.bf16.mxu0 0
  %550 = vmatpush2.bf16.msra.mxu0 %v510
  %551 = vmatprep.subr.bf16.mxu0 0
  %552 = vmatpush2.bf16.msra.mxu0 %v509
  %553 = vmatprep.subr.bf16.mxu0 0
  %554 = vmatpush2.bf16.msra.mxu0 %v508
  %555 = vmatprep.subr.bf16.mxu0 0
  %556 = vmatpush2.bf16.msra.mxu0 %v507
  %557 = vmatprep.subr.bf16.mxu0 0
  %558 = vmatpush2.bf16.msra.mxu0 %v506
  %559 = vmatprep.subr.bf16.mxu0 0
  %560 = vmatpush2.bf16.msra.mxu0 %v505
  %561 = vmatprep.mubr.bf16.mxu0 %v430
  %562 = vmatmul.mubr.bf16.gmra.mxu0 %v427
  %v563 = vpop.f32.mrf.mxu0
  %v564 = vadd.f32 0.0, %v563
  %v565 = vpop.f32.mrf.mxu0
  %v566 = vpop.f32.mrf.mxu0
  %v567 = vadd.f32 0.0, %v566
  %v568 = vpop.f32.mrf.mxu0
  %569 = vdwg.mxu0
  %v571 = vunpack.c.l.b16 %v344
  %v572 = vunpack.c.h.b16 %v344
  %v573 = vpack.c.b16 %v417, %v571
  %v574 = vpack.c.b16 %v418, %v572
  %v609 = vunpack.c.l.b16 %v348
  %v610 = vunpack.c.l.b16 %v349
  %v611 = vunpack.c.l.b16 %v350
  %v612 = vunpack.c.l.b16 %v351
  %v613 = vunpack.c.l.b16 %v352
  %v614 = vunpack.c.l.b16 %v353
  %v615 = vunpack.c.l.b16 %v354
  %v616 = vunpack.c.l.b16 %v355
  %v617 = vunpack.c.l.b16 %v356
  %v618 = vunpack.c.l.b16 %v357
  %v619 = vunpack.c.l.b16 %v358
  %v620 = vunpack.c.l.b16 %v359
  %v621 = vunpack.c.l.b16 %v360
  %v622 = vunpack.c.l.b16 %v361
  %v623 = vunpack.c.l.b16 %v362
  %v624 = vunpack.c.l.b16 %v363
  %v625 = vunpack.c.l.b16 %v364
  %v626 = vunpack.c.l.b16 %v365
  %v627 = vunpack.c.l.b16 %v366
  %v628 = vunpack.c.l.b16 %v367
  %v629 = vunpack.c.l.b16 %v368
  %v630 = vunpack.c.l.b16 %v369
  %v631 = vunpack.c.l.b16 %v370
  %v632 = vunpack.c.l.b16 %v371
  %v633 = vunpack.c.l.b16 %v372
  %v634 = vunpack.c.l.b16 %v373
  %v635 = vunpack.c.l.b16 %v374
  %v636 = vunpack.c.l.b16 %v375
  %v637 = vunpack.c.l.b16 %v376
  %v638 = vunpack.c.l.b16 %v377
  %v639 = vunpack.c.l.b16 %v378
  %v640 = vunpack.c.l.b16 %v379
  %v641 = vpack.c.b16 %v610, %v609
  %v642 = vpack.c.b16 %v612, %v611
  %v643 = vpack.c.b16 %v614, %v613
  %v644 = vpack.c.b16 %v616, %v615
  %v645 = vpack.c.b16 %v618, %v617
  %v646 = vpack.c.b16 %v620, %v619
  %v647 = vpack.c.b16 %v622, %v621
  %v648 = vpack.c.b16 %v624, %v623
  %v649 = vpack.c.b16 %v626, %v625
  %v650 = vpack.c.b16 %v628, %v627
  %v651 = vpack.c.b16 %v630, %v629
  %v652 = vpack.c.b16 %v632, %v631
  %v653 = vpack.c.b16 %v634, %v633
  %v654 = vpack.c.b16 %v636, %v635
  %v655 = vpack.c.b16 %v638, %v637
  %v656 = vpack.c.b16 %v640, %v639
  %673 = vmatprep.subr.bf16.mxu0 0
  %674 = vmatpush1.bf16.msra.mxu0 %v648
  %675 = vmatprep.subr.bf16.mxu0 0
  %676 = vmatpush1.bf16.msra.mxu0 %v647
  %677 = vmatprep.subr.bf16.mxu0 0
  %678 = vmatpush1.bf16.msra.mxu0 %v646
  %679 = vmatprep.subr.bf16.mxu0 0
  %680 = vmatpush1.bf16.msra.mxu0 %v645
  %681 = vmatprep.subr.bf16.mxu0 0
  %682 = vmatpush1.bf16.msra.mxu0 %v644
  %683 = vmatprep.subr.bf16.mxu0 0
  %684 = vmatpush1.bf16.msra.mxu0 %v643
  %685 = vmatprep.subr.bf16.mxu0 0
  %686 = vmatpush1.bf16.msra.mxu0 %v642
  %687 = vmatprep.subr.bf16.mxu0 0
  %688 = vmatpush1.bf16.msra.mxu0 %v641
  %689 = vmatprep.subr.bf16.mxu0 0
  %690 = vmatpush2.bf16.msra.mxu0 %v656
  %691 = vmatprep.subr.bf16.mxu0 0
  %692 = vmatpush2.bf16.msra.mxu0 %v655
  %693 = vmatprep.subr.bf16.mxu0 0
  %694 = vmatpush2.bf16.msra.mxu0 %v654
  %695 = vmatprep.subr.bf16.mxu0 0
  %696 = vmatpush2.bf16.msra.mxu0 %v653
  %697 = vmatprep.subr.bf16.mxu0 0
  %698 = vmatpush2.bf16.msra.mxu0 %v652
  %699 = vmatprep.subr.bf16.mxu0 0
  %700 = vmatpush2.bf16.msra.mxu0 %v651
  %701 = vmatprep.subr.bf16.mxu0 0
  %702 = vmatpush2.bf16.msra.mxu0 %v650
  %703 = vmatprep.subr.bf16.mxu0 0
  %704 = vmatpush2.bf16.msra.mxu0 %v649
  %705 = vmatprep.mubr.bf16.mxu0 %v574
  %706 = vmatmul.mubr.bf16.gmra.mxu0 %v573
  %v707 = vpop.f32.mrf.mxu0
  %v708 = vadd.f32 %v564, %v707
  %v709 = vpop.f32.mrf.mxu0
  %v710 = vpop.f32.mrf.mxu0
  %v711 = vadd.f32 %v567, %v710
  %v712 = vpop.f32.mrf.mxu0
  %713 = vdwg.mxu0
  %v714 = vadd.f32 %v708, %v711
  %v715 = vrot.slane %v714, 4
  %v716 = vadd.f32 %v714, %v715
  %v717 = vrot.slane %v716, 2
  %v718 = vadd.f32 %v716, %v717
  %v719 = vrot.slane %v718, 1
  %v720 = vadd.f32 %v718, %v719
  %v721 = vmul.f32 %v708, %v708
  %v722 = vmul.f32 %v711, %v711
  %v723 = vadd.f32 %v721, %v722
  %v724 = vrot.slane %v723, 4
  %v725 = vadd.f32 %v723, %v724
  %v726 = vrot.slane %v725, 2
  %v727 = vadd.f32 %v725, %v726
  %v728 = vrot.slane %v727, 1
  %v729 = vadd.f32 %v727, %v728
  %v730 = vsel %vm284, %v720, %v729
  %v731 = vld [vmem:[%s8] sm:$0xff]
  %v732 = vld [vmem:[%s8 + $0x8] sm:$0xff]
  %v733 = vld [vmem:[%s8 + $0x10] sm:$0xff]
  %v734 = vld [vmem:[%s8 + $0x18] sm:$0xff]
  %v735 = vld [vmem:[%s8 + $0x20] sm:$0xff]
  %v736 = vld [vmem:[%s8 + $0x28] sm:$0xff]
  %v737 = vld [vmem:[%s8 + $0x30] sm:$0xff]
  %v738 = vld [vmem:[%s8 + $0x38] sm:$0xff]
  %v739 = vld [vmem:[%s8 + $0x40] sm:$0xff]
  %v740 = vld [vmem:[%s8 + $0x48] sm:$0xff]
  %v741 = vld [vmem:[%s8 + $0x50] sm:$0xff]
  %v742 = vld [vmem:[%s8 + $0x58] sm:$0xff]
  %v743 = vld [vmem:[%s8 + $0x60] sm:$0xff]
  %v744 = vld [vmem:[%s8 + $0x68] sm:$0xff]
  %v745 = vld [vmem:[%s8 + $0x70] sm:$0xff]
  %v746 = vld [vmem:[%s8 + $0x78] sm:$0xff]
  %747 = vmatprep.subr.mxu0 0.0
  %748 = vmatpush1.msra.mxu0 %v746
  %749 = vmatprep.subr.mxu0 0.0
  %750 = vmatpush1.msra.mxu0 %v745
  %751 = vmatprep.subr.mxu0 0.0
  %752 = vmatpush1.msra.mxu0 %v744
  %753 = vmatprep.subr.mxu0 0.0
  %754 = vmatpush1.msra.mxu0 %v743
  %755 = vmatprep.subr.mxu0 0.0
  %756 = vmatpush1.msra.mxu0 %v742
  %757 = vmatprep.subr.mxu0 0.0
  %758 = vmatpush1.msra.mxu0 %v741
  %759 = vmatprep.subr.mxu0 0.0
  %760 = vmatpush1.msra.mxu0 %v740
  %761 = vmatprep.subr.mxu0 0.0
  %762 = vmatpush1.msra.mxu0 %v739
  %763 = vmatprep.subr.mxu0 0.0
  %764 = vmatpush1.msra.mxu0 %v738
  %765 = vmatprep.subr.mxu0 0.0
  %766 = vmatpush1.msra.mxu0 %v737
  %767 = vmatprep.subr.mxu0 0.0
  %768 = vmatpush1.msra.mxu0 %v736
  %769 = vmatprep.subr.mxu0 0.0
  %770 = vmatpush1.msra.mxu0 %v735
  %771 = vmatprep.subr.mxu0 0.0
  %772 = vmatpush1.msra.mxu0 %v734
  %773 = vmatprep.subr.mxu0 0.0
  %774 = vmatpush1.msra.mxu0 %v733
  %775 = vmatprep.subr.mxu0 0.0
  %776 = vmatpush1.msra.mxu0 %v732
  %777 = vmatprep.subr.mxu0 0.0
  %778 = vmatpush1.msra.mxu0 %v731
  %779 = vmatprep.subr.mxu0 0.0
  %780 = vmatpush2.msra.mxu0 0.0
  %781 = vmatprep.subr.mxu0 0.0
  %782 = vmatpush2.msra.mxu0 0.0
  %783 = vmatprep.subr.mxu0 0.0
  %784 = vmatpush2.msra.mxu0 0.0
  %785 = vmatprep.subr.mxu0 0.0
  %786 = vmatpush2.msra.mxu0 0.0
  %787 = vmatprep.subr.mxu0 0.0
  %788 = vmatpush2.msra.mxu0 0.0
  %789 = vmatprep.subr.mxu0 0.0
  %790 = vmatpush2.msra.mxu0 0.0
  %791 = vmatprep.subr.mxu0 0.0
  %792 = vmatpush2.msra.mxu0 0.0
  %793 = vmatprep.subr.mxu0 0.0
  %794 = vmatpush2.msra.mxu0 0.0
  %795 = vmatprep.subr.mxu0 0.0
  %796 = vmatpush2.msra.mxu0 0.0
  %797 = vmatprep.subr.mxu0 0.0
  %798 = vmatpush2.msra.mxu0 0.0
  %799 = vmatprep.subr.mxu0 0.0
  %800 = vmatpush2.msra.mxu0 0.0
  %801 = vmatprep.subr.mxu0 0.0
  %802 = vmatpush2.msra.mxu0 0.0
  %803 = vmatprep.subr.mxu0 0.0
  %804 = vmatpush2.msra.mxu0 0.0
  %805 = vmatprep.subr.mxu0 0.0
  %806 = vmatpush2.msra.mxu0 0.0
  %807 = vmatprep.subr.mxu0 0.0
  %808 = vmatpush2.msra.mxu0 0.0
  %809 = vmatprep.subr.mxu0 0.0
  %810 = vmatpush2.msra.mxu0 0.0
  %811 = vmatprep.mubr.f32.mxu0 0.0
  %812 = vmatmul.mubr.f32.gmra.mxu0 %v730
  %v813 = vpop.f32.mrf.mxu0
  %v814 = vadd.f32 0.0, %v813
  %v815 = vpop.f32.mrf.mxu0
  %816 = vdwg.mxu0
  %v817 = vmul.f32 %v814, %v814
  %v819 = vrot.slane %v817, 7
  %v821 = vsub.f32 %v814, %v819
  %v822 = vadd.f32 %v821, 1e-05
  %v823 = vrsqrt.pop %v822
  %v824 = vld [vmem:[%s10] sm:$0x1]
  %v826 = vlaneseq
  %v827 = vshrl.u32 %v826, 7
  %v828 = vsub.s32 0, %v827
  %v829 = vrot.slane %v824, %v828
  %v831 = vmul.f32 %v823, %v829
  %v832 = vld [vmem:[%s11] sm:$0x1]
  %v834 = vrot.slane %v831, 1
  %v836 = vmul.f32 %v814, %v834
  %v837 = vsub.f32 %v832, %v836
  %v839 = vlaneseq
  %v840 = vshrl.u32 %v839, 7
  %v841 = vsub.s32 0, %v840
  %v842 = vrot.slane %v837, %v841
  %v844 = vsel %vm284, %v834, %v842
  %v845 = vld [vmem:[%s9] sm:$0xff]
  %v846 = vld [vmem:[%s9 + $0x8] sm:$0xff]
  %vm847 = vcmask 130048
  %v849 = vsel %vm847, %v844, 0
  %851 = vmatprep.subr.mxu0 0.0
  %852 = vmatpush1.msra.mxu0 0.0
  %853 = vmatprep.subr.mxu0 0.0
  %854 = vmatpush1.msra.mxu0 0.0
  %855 = vmatprep.subr.mxu0 0.0
  %856 = vmatpush1.msra.mxu0 0.0
  %857 = vmatprep.subr.mxu0 0.0
  %858 = vmatpush1.msra.mxu0 0.0
  %859 = vmatprep.subr.mxu0 0.0
  %860 = vmatpush1.msra.mxu0 0.0
  %861 = vmatprep.subr.mxu0 0.0
  %862 = vmatpush1.msra.mxu0 0.0
  %863 = vmatprep.subr.mxu0 0.0
  %864 = vmatpush1.msra.mxu0 0.0
  %865 = vmatprep.subr.mxu0 0.0
  %866 = vmatpush1.msra.mxu0 0.0
  %867 = vmatprep.subr.mxu0 0.0
  %868 = vmatpush1.msra.mxu0 0.0
  %869 = vmatprep.subr.mxu0 0.0
  %870 = vmatpush1.msra.mxu0 0.0
  %871 = vmatprep.subr.mxu0 0.0
  %872 = vmatpush1.msra.mxu0 0.0
  %873 = vmatprep.subr.mxu0 0.0
  %874 = vmatpush1.msra.mxu0 0.0
  %875 = vmatprep.subr.mxu0 0.0
  %876 = vmatpush1.msra.mxu0 0.0
  %877 = vmatprep.subr.mxu0 0.0
  %878 = vmatpush1.msra.mxu0 0.0
  %879 = vmatprep.subr.mxu0 0.0
  %880 = vmatpush1.msra.mxu0 %v846
  %881 = vmatprep.subr.mxu0 0.0
  %882 = vmatpush1.msra.mxu0 %v845
  %883 = vmatprep.subr.mxu0 0.0
  %884 = vmatpush2.msra.mxu0 0.0
  %885 = vmatprep.subr.mxu0 0.0
  %886 = vmatpush2.msra.mxu0 0.0
  %887 = vmatprep.subr.mxu0 0.0
  %888 = vmatpush2.msra.mxu0 0.0
  %889 = vmatprep.subr.mxu0 0.0
  %890 = vmatpush2.msra.mxu0 0.0
  %891 = vmatprep.subr.mxu0 0.0
  %892 = vmatpush2.msra.mxu0 0.0
  %893 = vmatprep.subr.mxu0 0.0
  %894 = vmatpush2.msra.mxu0 0.0
  %895 = vmatprep.subr.mxu0 0.0
  %896 = vmatpush2.msra.mxu0 0.0
  %897 = vmatprep.subr.mxu0 0.0
  %898 = vmatpush2.msra.mxu0 0.0
  %899 = vmatprep.subr.mxu0 0.0
  %900 = vmatpush2.msra.mxu0 0.0
  %901 = vmatprep.subr.mxu0 0.0
  %902 = vmatpush2.msra.mxu0 0.0
  %903 = vmatprep.subr.mxu0 0.0
  %904 = vmatpush2.msra.mxu0 0.0
  %905 = vmatprep.subr.mxu0 0.0
  %906 = vmatpush2.msra.mxu0 0.0
  %907 = vmatprep.subr.mxu0 0.0
  %908 = vmatpush2.msra.mxu0 0.0
  %909 = vmatprep.subr.mxu0 0.0
  %910 = vmatpush2.msra.mxu0 0.0
  %911 = vmatprep.subr.mxu0 0.0
  %912 = vmatpush2.msra.mxu0 0.0
  %913 = vmatprep.subr.mxu0 0.0
  %914 = vmatpush2.msra.mxu0 0.0
  %915 = vmatprep.mubr.f32.mxu0 0.0
  %916 = vmatmul.mubr.f32.gmra.mxu0 %v849
  %v917 = vpop.f32.mrf.mxu0
  %v918 = vadd.f32 0.0, %v917
  %v919 = vpop.f32.mrf.mxu0
  %920 = vdwg.mxu0
  %v921 = vlaneseq
  %v922 = vshrl.u32 %v921, 7
  %v923 = vsub.s32 0, %v922
  %v924 = vrot.slane %v918, %v923
  %v925 = vmul.f32 %v708, %v924
  %v926 = vmul.f32 %v711, %v924
  %v927 = vlaneseq
  %v928 = vshrl.u32 %v927, 7
  %v929 = vsub.s32 1, %v928
  %v930 = vrot.slane %v918, %v929
  %v931 = vadd.f32 %v925, %v930
  %v932 = vadd.f32 %v926, %v930
  %vm933 = vcmp.ge.f32.partialorder %v931, 0.0
  %vm934 = vcmp.ge.f32.partialorder %v932, 0.0
  %v935 = vmul.f32 %v931, 0.2
  %v936 = vmul.f32 %v932, 0.2
  %v937 = vsel %vm933, %v931, %v935
  %v938 = vsel %vm934, %v932, %v936
  %v939 = vpack.c.bf16 %v938, %v937
  %v941 = vrot.slane %v939, 1
  %v942 = vrot.slane %v939, 2
  %v943 = vrot.slane %v939, 3
  %v946 = vsel %vm284, %v939, %v941
  %v948 = vsel %vm288, %v946, %v942
  %v950 = vsel %vm291, %v948, %v943
  %v952 = vrot.slane %v939, 4
  %v953 = vsel %vm284, %v941, %v942
  %v954 = vsel %vm288, %v953, %v943
  %v956 = vsel %vm291, %v954, %v952
  %957 = vst [vmem:[#allocation3 + $0x4] sm:$0xf] %v950
  %v959 = vunpack.c.l.b16 %v956
  %v960 = vpack.c.b16 %v959, %v959
  %v961 = vrot.slane %v960, 7
  %v962 = vrot.slane %v961, 4
  %965 = vst [vmem:[#allocation3] sm:$0xe] %v961
  %966 = vst [vmem:[#allocation3 + $0x8] sm:$0x1] %v962
  %v967 = vld [vmem:[#allocation3] sm:$0xff]
  %v968 = vld [vmem:[#allocation3] sm:$0xee]
  %v969 = vld [vmem:[#allocation3 + $0x8] sm:$0x11]
  %v970 = vld [vmem:[%s5] sm:$0xf]
  %v971 = vld [vmem:[%s5 + $0x4] sm:$0xf]
  %v972 = vld [vmem:[%s5 + $0x8] sm:$0xf]
  %v973 = vld [vmem:[%s5 + $0xc] sm:$0xf]
  %v974 = vld [vmem:[%s5 + $0x10] sm:$0xf]
  %v975 = vld [vmem:[%s5 + $0x14] sm:$0xf]
  %v976 = vld [vmem:[%s5 + $0x18] sm:$0xf]
  %v977 = vld [vmem:[%s5 + $0x1c] sm:$0xf]
  %v978 = vld [vmem:[%s5 + $0x20] sm:$0xf]
  %v979 = vld [vmem:[%s5 + $0x24] sm:$0xf]
  %v980 = vld [vmem:[%s5 + $0x28] sm:$0xf]
  %v981 = vld [vmem:[%s5 + $0x2c] sm:$0xf]
  %v982 = vld [vmem:[%s5 + $0x30] sm:$0xf]
  %v983 = vld [vmem:[%s5 + $0x34] sm:$0xf]
  %v984 = vld [vmem:[%s5 + $0x38] sm:$0xf]
  %v985 = vld [vmem:[%s5 + $0x3c] sm:$0xf]
  %v986 = vld [vmem:[%s5 + $0x40] sm:$0xf]
  %v987 = vld [vmem:[%s5 + $0x44] sm:$0xf]
  %v988 = vld [vmem:[%s5 + $0x48] sm:$0xf]
  %v989 = vld [vmem:[%s5 + $0x4c] sm:$0xf]
  %v990 = vld [vmem:[%s5 + $0x50] sm:$0xf]
  %v991 = vld [vmem:[%s5 + $0x54] sm:$0xf]
  %v992 = vld [vmem:[%s5 + $0x58] sm:$0xf]
  %v993 = vld [vmem:[%s5 + $0x5c] sm:$0xf]
  %v994 = vld [vmem:[%s5 + $0x60] sm:$0xf]
  %v995 = vld [vmem:[%s5 + $0x64] sm:$0xf]
  %v996 = vld [vmem:[%s5 + $0x68] sm:$0xf]
  %v997 = vld [vmem:[%s5 + $0x6c] sm:$0xf]
  %v998 = vld [vmem:[%s5 + $0x70] sm:$0xf]
  %v999 = vld [vmem:[%s5 + $0x74] sm:$0xf]
  %v1000 = vld [vmem:[%s5 + $0x78] sm:$0xf]
  %v1001 = vld [vmem:[%s5 + $0x7c] sm:$0xf]
  %v1002 = vld [vmem:[%s6] sm:$0xf]
  %v1003 = vld [vmem:[%s6 + $0x4] sm:$0xf]
  %v1004 = vld [vmem:[%s6 + $0x8] sm:$0xf]
  %v1005 = vld [vmem:[%s6 + $0xc] sm:$0xf]
  %v1006 = vld [vmem:[%s6 + $0x10] sm:$0xf]
  %v1007 = vld [vmem:[%s6 + $0x14] sm:$0xf]
  %v1008 = vld [vmem:[%s6 + $0x18] sm:$0xf]
  %v1009 = vld [vmem:[%s6 + $0x1c] sm:$0xf]
  %v1010 = vld [vmem:[%s6 + $0x20] sm:$0xf]
  %v1011 = vld [vmem:[%s6 + $0x24] sm:$0xf]
  %v1012 = vld [vmem:[%s6 + $0x28] sm:$0xf]
  %v1013 = vld [vmem:[%s6 + $0x2c] sm:$0xf]
  %v1014 = vld [vmem:[%s6 + $0x30] sm:$0xf]
  %v1015 = vld [vmem:[%s6 + $0x34] sm:$0xf]
  %v1016 = vld [vmem:[%s6 + $0x38] sm:$0xf]
  %v1017 = vld [vmem:[%s6 + $0x3c] sm:$0xf]
  %v1018 = vld [vmem:[%s6 + $0x40] sm:$0xf]
  %v1019 = vld [vmem:[%s6 + $0x44] sm:$0xf]
  %v1020 = vld [vmem:[%s6 + $0x48] sm:$0xf]
  %v1021 = vld [vmem:[%s6 + $0x4c] sm:$0xf]
  %v1022 = vld [vmem:[%s6 + $0x50] sm:$0xf]
  %v1023 = vld [vmem:[%s6 + $0x54] sm:$0xf]
  %v1024 = vld [vmem:[%s6 + $0x58] sm:$0xf]
  %v1025 = vld [vmem:[%s6 + $0x5c] sm:$0xf]
  %v1026 = vld [vmem:[%s6 + $0x60] sm:$0xf]
  %v1027 = vld [vmem:[%s6 + $0x64] sm:$0xf]
  %v1028 = vld [vmem:[%s6 + $0x68] sm:$0xf]
  %v1029 = vld [vmem:[%s6 + $0x6c] sm:$0xf]
  %v1030 = vld [vmem:[%s6 + $0x70] sm:$0xf]
  %v1031 = vld [vmem:[%s6 + $0x74] sm:$0xf]
  %v1032 = vld [vmem:[%s6 + $0x78] sm:$0xf]
  %v1033 = vld [vmem:[%s6 + $0x7c] sm:$0xf]
  %v1036 = vunpack.c.l.b16 %v968
  %v1037 = vunpack.c.h.b16 %v968
  %v1038 = vunpack.c.l.b16 %v969
  %v1039 = vunpack.c.h.b16 %v969
  %v1040 = vpack.c.b16 %v1038, %v1036
  %v1041 = vpack.c.b16 %v1039, %v1037
  %v1042 = vrot.slane %v1040, 1
  %v1043 = vrot.slane %v1041, 1
  %v1078 = vunpack.c.l.b16 %v1002
  %v1079 = vunpack.c.l.b16 %v1003
  %v1080 = vunpack.c.l.b16 %v1004
  %v1081 = vunpack.c.l.b16 %v1005
  %v1082 = vunpack.c.l.b16 %v1006
  %v1083 = vunpack.c.l.b16 %v1007
  %v1084 = vunpack.c.l.b16 %v1008
  %v1085 = vunpack.c.l.b16 %v1009
  %v1086 = vunpack.c.l.b16 %v1010
  %v1087 = vunpack.c.l.b16 %v1011
  %v1088 = vunpack.c.l.b16 %v1012
  %v1089 = vunpack.c.l.b16 %v1013
  %v1090 = vunpack.c.l.b16 %v1014
  %v1091 = vunpack.c.l.b16 %v1015
  %v1092 = vunpack.c.l.b16 %v1016
  %v1093 = vunpack.c.l.b16 %v1017
  %v1094 = vunpack.c.l.b16 %v1018
  %v1095 = vunpack.c.l.b16 %v1019
  %v1096 = vunpack.c.l.b16 %v1020
  %v1097 = vunpack.c.l.b16 %v1021
  %v1098 = vunpack.c.l.b16 %v1022
  %v1099 = vunpack.c.l.b16 %v1023
  %v1100 = vunpack.c.l.b16 %v1024
  %v1101 = vunpack.c.l.b16 %v1025
  %v1102 = vunpack.c.l.b16 %v1026
  %v1103 = vunpack.c.l.b16 %v1027
  %v1104 = vunpack.c.l.b16 %v1028
  %v1105 = vunpack.c.l.b16 %v1029
  %v1106 = vunpack.c.l.b16 %v1030
  %v1107 = vunpack.c.l.b16 %v1031
  %v1108 = vunpack.c.l.b16 %v1032
  %v1109 = vunpack.c.l.b16 %v1033
  %v1110 = vpack.c.b16 %v1079, %v1078
  %v1111 = vpack.c.b16 %v1081, %v1080
  %v1112 = vpack.c.b16 %v1083, %v1082
  %v1113 = vpack.c.b16 %v1085, %v1084
  %v1114 = vpack.c.b16 %v1087, %v1086
  %v1115 = vpack.c.b16 %v1089, %v1088
  %v1116 = vpack.c.b16 %v1091, %v1090
  %v1117 = vpack.c.b16 %v1093, %v1092
  %v1118 = vpack.c.b16 %v1095, %v1094
  %v1119 = vpack.c.b16 %v1097, %v1096
  %v1120 = vpack.c.b16 %v1099, %v1098
  %v1121 = vpack.c.b16 %v1101, %v1100
  %v1122 = vpack.c.b16 %v1103, %v1102
  %v1123 = vpack.c.b16 %v1105, %v1104
  %v1124 = vpack.c.b16 %v1107, %v1106
  %v1125 = vpack.c.b16 %v1109, %v1108
  %1142 = vmatprep.subr.bf16.mxu0 0
  %1143 = vmatpush1.bf16.msra.mxu0 %v1117
  %1144 = vmatprep.subr.bf16.mxu0 0
  %1145 = vmatpush1.bf16.msra.mxu0 %v1116
  %1146 = vmatprep.subr.bf16.mxu0 0
  %1147 = vmatpush1.bf16.msra.mxu0 %v1115
  %1148 = vmatprep.subr.bf16.mxu0 0
  %1149 = vmatpush1.bf16.msra.mxu0 %v1114
  %1150 = vmatprep.subr.bf16.mxu0 0
  %1151 = vmatpush1.bf16.msra.mxu0 %v1113
  %1152 = vmatprep.subr.bf16.mxu0 0
  %1153 = vmatpush1.bf16.msra.mxu0 %v1112
  %1154 = vmatprep.subr.bf16.mxu0 0
  %1155 = vmatpush1.bf16.msra.mxu0 %v1111
  %1156 = vmatprep.subr.bf16.mxu0 0
  %1157 = vmatpush1.bf16.msra.mxu0 %v1110
  %1158 = vmatprep.subr.bf16.mxu0 0
  %1159 = vmatpush2.bf16.msra.mxu0 %v1125
  %1160 = vmatprep.subr.bf16.mxu0 0
  %1161 = vmatpush2.bf16.msra.mxu0 %v1124
  %1162 = vmatprep.subr.bf16.mxu0 0
  %1163 = vmatpush2.bf16.msra.mxu0 %v1123
  %1164 = vmatprep.subr.bf16.mxu0 0
  %1165 = vmatpush2.bf16.msra.mxu0 %v1122
  %1166 = vmatprep.subr.bf16.mxu0 0
  %1167 = vmatpush2.bf16.msra.mxu0 %v1121
  %1168 = vmatprep.subr.bf16.mxu0 0
  %1169 = vmatpush2.bf16.msra.mxu0 %v1120
  %1170 = vmatprep.subr.bf16.mxu0 0
  %1171 = vmatpush2.bf16.msra.mxu0 %v1119
  %1172 = vmatprep.subr.bf16.mxu0 0
  %1173 = vmatpush2.bf16.msra.mxu0 %v1118
  %1174 = vmatprep.mubr.bf16.mxu0 %v1043
  %1175 = vmatmul.mubr.bf16.gmra.mxu0 %v1042
  %v1176 = vpop.f32.mrf.mxu0
  %v1177 = vadd.f32 0.0, %v1176
  %v1178 = vpop.f32.mrf.mxu0
  %v1179 = vpop.f32.mrf.mxu0
  %v1180 = vpop.f32.mrf.mxu0
  %1181 = vdwg.mxu0
  %v1183 = vunpack.c.l.b16 %v967
  %v1184 = vunpack.c.h.b16 %v967
  %v1185 = vpack.c.b16 %v1183, %v1183
  %v1186 = vpack.c.b16 %v1184, %v1184
  %v1221 = vunpack.c.l.b16 %v970
  %v1222 = vunpack.c.l.b16 %v971
  %v1223 = vunpack.c.l.b16 %v972
  %v1224 = vunpack.c.l.b16 %v973
  %v1225 = vunpack.c.l.b16 %v974
  %v1226 = vunpack.c.l.b16 %v975
  %v1227 = vunpack.c.l.b16 %v976
  %v1228 = vunpack.c.l.b16 %v977
  %v1229 = vunpack.c.l.b16 %v978
  %v1230 = vunpack.c.l.b16 %v979
  %v1231 = vunpack.c.l.b16 %v980
  %v1232 = vunpack.c.l.b16 %v981
  %v1233 = vunpack.c.l.b16 %v982
  %v1234 = vunpack.c.l.b16 %v983
  %v1235 = vunpack.c.l.b16 %v984
  %v1236 = vunpack.c.l.b16 %v985
  %v1237 = vunpack.c.l.b16 %v986
  %v1238 = vunpack.c.l.b16 %v987
  %v1239 = vunpack.c.l.b16 %v988
  %v1240 = vunpack.c.l.b16 %v989
  %v1241 = vunpack.c.l.b16 %v990
  %v1242 = vunpack.c.l.b16 %v991
  %v1243 = vunpack.c.l.b16 %v992
  %v1244 = vunpack.c.l.b16 %v993
  %v1245 = vunpack.c.l.b16 %v994
  %v1246 = vunpack.c.l.b16 %v995
  %v1247 = vunpack.c.l.b16 %v996
  %v1248 = vunpack.c.l.b16 %v997
  %v1249 = vunpack.c.l.b16 %v998
  %v1250 = vunpack.c.l.b16 %v999
  %v1251 = vunpack.c.l.b16 %v1000
  %v1252 = vunpack.c.l.b16 %v1001
  %v1253 = vpack.c.b16 %v1222, %v1221
  %v1254 = vpack.c.b16 %v1224, %v1223
  %v1255 = vpack.c.b16 %v1226, %v1225
  %v1256 = vpack.c.b16 %v1228, %v1227
  %v1257 = vpack.c.b16 %v1230, %v1229
  %v1258 = vpack.c.b16 %v1232, %v1231
  %v1259 = vpack.c.b16 %v1234, %v1233
  %v1260 = vpack.c.b16 %v1236, %v1235
  %v1261 = vpack.c.b16 %v1238, %v1237
  %v1262 = vpack.c.b16 %v1240, %v1239
  %v1263 = vpack.c.b16 %v1242, %v1241
  %v1264 = vpack.c.b16 %v1244, %v1243
  %v1265 = vpack.c.b16 %v1246, %v1245
  %v1266 = vpack.c.b16 %v1248, %v1247
  %v1267 = vpack.c.b16 %v1250, %v1249
  %v1268 = vpack.c.b16 %v1252, %v1251
  %1285 = vmatprep.subr.bf16.mxu0 0
  %1286 = vmatpush1.bf16.msra.mxu0 %v1260
  %1287 = vmatprep.subr.bf16.mxu0 0
  %1288 = vmatpush1.bf16.msra.mxu0 %v1259
  %1289 = vmatprep.subr.bf16.mxu0 0
  %1290 = vmatpush1.bf16.msra.mxu0 %v1258
  %1291 = vmatprep.subr.bf16.mxu0 0
  %1292 = vmatpush1.bf16.msra.mxu0 %v1257
  %1293 = vmatprep.subr.bf16.mxu0 0
  %1294 = vmatpush1.bf16.msra.mxu0 %v1256
  %1295 = vmatprep.subr.bf16.mxu0 0
  %1296 = vmatpush1.bf16.msra.mxu0 %v1255
  %1297 = vmatprep.subr.bf16.mxu0 0
  %1298 = vmatpush1.bf16.msra.mxu0 %v1254
  %1299 = vmatprep.subr.bf16.mxu0 0
  %1300 = vmatpush1.bf16.msra.mxu0 %v1253
  %1301 = vmatprep.subr.bf16.mxu0 0
  %1302 = vmatpush2.bf16.msra.mxu0 %v1268
  %1303 = vmatprep.subr.bf16.mxu0 0
  %1304 = vmatpush2.bf16.msra.mxu0 %v1267
  %1305 = vmatprep.subr.bf16.mxu0 0
  %1306 = vmatpush2.bf16.msra.mxu0 %v1266
  %1307 = vmatprep.subr.bf16.mxu0 0
  %1308 = vmatpush2.bf16.msra.mxu0 %v1265
  %1309 = vmatprep.subr.bf16.mxu0 0
  %1310 = vmatpush2.bf16.msra.mxu0 %v1264
  %1311 = vmatprep.subr.bf16.mxu0 0
  %1312 = vmatpush2.bf16.msra.mxu0 %v1263
  %1313 = vmatprep.subr.bf16.mxu0 0
  %1314 = vmatpush2.bf16.msra.mxu0 %v1262
  %1315 = vmatprep.subr.bf16.mxu0 0
  %1316 = vmatpush2.bf16.msra.mxu0 %v1261
  %1317 = vmatprep.mubr.bf16.mxu0 %v1186
  %1318 = vmatmul.mubr.bf16.gmra.mxu0 %v1185
  %v1319 = vpop.f32.mrf.mxu0
  %v1320 = vadd.f32 %v1177, %v1319
  %v1321 = vpop.f32.mrf.mxu0
  %v1322 = vpop.f32.mrf.mxu0
  %v1323 = vpop.f32.mrf.mxu0
  %1324 = vdwg.mxu0
  %v1325 = vrot.slane %v1320, 4
  %v1326 = vadd.f32 %v1320, %v1325
  %v1327 = vrot.slane %v1326, 2
  %v1328 = vadd.f32 %v1326, %v1327
  %v1329 = vrot.slane %v1328, 1
  %v1330 = vadd.f32 %v1328, %v1329
  %v1331 = vmul.f32 %v1320, %v1320
  %v1332 = vrot.slane %v1331, 4
  %v1333 = vadd.f32 %v1331, %v1332
  %v1334 = vrot.slane %v1333, 2
  %v1335 = vadd.f32 %v1333, %v1334
  %v1336 = vrot.slane %v1335, 1
  %v1337 = vadd.f32 %v1335, %v1336
  %v1338 = vsel %vm284, %v1330, %v1337
  %v1339 = vld [vmem:[%s12] sm:$0xff]
  %v1340 = vld [vmem:[%s12 + $0x8] sm:$0xff]
  %v1341 = vld [vmem:[%s12 + $0x10] sm:$0xff]
  %v1342 = vld [vmem:[%s12 + $0x18] sm:$0xff]
  %v1343 = vld [vmem:[%s12 + $0x20] sm:$0xff]
  %v1344 = vld [vmem:[%s12 + $0x28] sm:$0xff]
  %v1345 = vld [vmem:[%s12 + $0x30] sm:$0xff]
  %v1346 = vld [vmem:[%s12 + $0x38] sm:$0xff]
  %v1347 = vld [vmem:[%s12 + $0x40] sm:$0xff]
  %v1348 = vld [vmem:[%s12 + $0x48] sm:$0xff]
  %v1349 = vld [vmem:[%s12 + $0x50] sm:$0xff]
  %v1350 = vld [vmem:[%s12 + $0x58] sm:$0xff]
  %v1351 = vld [vmem:[%s12 + $0x60] sm:$0xff]
  %v1352 = vld [vmem:[%s12 + $0x68] sm:$0xff]
  %v1353 = vld [vmem:[%s12 + $0x70] sm:$0xff]
  %v1354 = vld [vmem:[%s12 + $0x78] sm:$0xff]
  %1355 = vmatprep.subr.mxu0 0.0
  %1356 = vmatpush1.msra.mxu0 %v1354
  %1357 = vmatprep.subr.mxu0 0.0
  %1358 = vmatpush1.msra.mxu0 %v1353
  %1359 = vmatprep.subr.mxu0 0.0
  %1360 = vmatpush1.msra.mxu0 %v1352
  %1361 = vmatprep.subr.mxu0 0.0
  %1362 = vmatpush1.msra.mxu0 %v1351
  %1363 = vmatprep.subr.mxu0 0.0
  %1364 = vmatpush1.msra.mxu0 %v1350
  %1365 = vmatprep.subr.mxu0 0.0
  %1366 = vmatpush1.msra.mxu0 %v1349
  %1367 = vmatprep.subr.mxu0 0.0
  %1368 = vmatpush1.msra.mxu0 %v1348
  %1369 = vmatprep.subr.mxu0 0.0
  %1370 = vmatpush1.msra.mxu0 %v1347
  %1371 = vmatprep.subr.mxu0 0.0
  %1372 = vmatpush1.msra.mxu0 %v1346
  %1373 = vmatprep.subr.mxu0 0.0
  %1374 = vmatpush1.msra.mxu0 %v1345
  %1375 = vmatprep.subr.mxu0 0.0
  %1376 = vmatpush1.msra.mxu0 %v1344
  %1377 = vmatprep.subr.mxu0 0.0
  %1378 = vmatpush1.msra.mxu0 %v1343
  %1379 = vmatprep.subr.mxu0 0.0
  %1380 = vmatpush1.msra.mxu0 %v1342
  %1381 = vmatprep.subr.mxu0 0.0
  %1382 = vmatpush1.msra.mxu0 %v1341
  %1383 = vmatprep.subr.mxu0 0.0
  %1384 = vmatpush1.msra.mxu0 %v1340
  %1385 = vmatprep.subr.mxu0 0.0
  %1386 = vmatpush1.msra.mxu0 %v1339
  %1387 = vmatprep.subr.mxu0 0.0
  %1388 = vmatpush2.msra.mxu0 0.0
  %1389 = vmatprep.subr.mxu0 0.0
  %1390 = vmatpush2.msra.mxu0 0.0
  %1391 = vmatprep.subr.mxu0 0.0
  %1392 = vmatpush2.msra.mxu0 0.0
  %1393 = vmatprep.subr.mxu0 0.0
  %1394 = vmatpush2.msra.mxu0 0.0
  %1395 = vmatprep.subr.mxu0 0.0
  %1396 = vmatpush2.msra.mxu0 0.0
  %1397 = vmatprep.subr.mxu0 0.0
  %1398 = vmatpush2.msra.mxu0 0.0
  %1399 = vmatprep.subr.mxu0 0.0
  %1400 = vmatpush2.msra.mxu0 0.0
  %1401 = vmatprep.subr.mxu0 0.0
  %1402 = vmatpush2.msra.mxu0 0.0
  %1403 = vmatprep.subr.mxu0 0.0
  %1404 = vmatpush2.msra.mxu0 0.0
  %1405 = vmatprep.subr.mxu0 0.0
  %1406 = vmatpush2.msra.mxu0 0.0
  %1407 = vmatprep.subr.mxu0 0.0
  %1408 = vmatpush2.msra.mxu0 0.0
  %1409 = vmatprep.subr.mxu0 0.0
  %1410 = vmatpush2.msra.mxu0 0.0
  %1411 = vmatprep.subr.mxu0 0.0
  %1412 = vmatpush2.msra.mxu0 0.0
  %1413 = vmatprep.subr.mxu0 0.0
  %1414 = vmatpush2.msra.mxu0 0.0
  %1415 = vmatprep.subr.mxu0 0.0
  %1416 = vmatpush2.msra.mxu0 0.0
  %1417 = vmatprep.subr.mxu0 0.0
  %1418 = vmatpush2.msra.mxu0 0.0
  %1419 = vmatprep.mubr.f32.mxu0 0.0
  %1420 = vmatmul.mubr.f32.gmra.mxu0 %v1338
  %v1421 = vpop.f32.mrf.mxu0
  %v1422 = vadd.f32 0.0, %v1421
  %v1423 = vpop.f32.mrf.mxu0
  %1424 = vdwg.mxu0
  %v1425 = vmul.f32 %v1422, %v1422
  %v1427 = vrot.slane %v1425, 7
  %v1429 = vsub.f32 %v1422, %v1427
  %v1430 = vadd.f32 %v1429, 1e-05
  %v1431 = vrsqrt.pop %v1430
  %v1432 = vld [vmem:[%s14] sm:$0x1]
  %v1434 = vlaneseq
  %v1435 = vshrl.u32 %v1434, 7
  %v1436 = vsub.s32 0, %v1435
  %v1437 = vrot.slane %v1432, %v1436
  %v1439 = vmul.f32 %v1431, %v1437
  %v1440 = vld [vmem:[%s15] sm:$0x1]
  %v1442 = vrot.slane %v1439, 1
  %v1444 = vmul.f32 %v1422, %v1442
  %v1445 = vsub.f32 %v1440, %v1444
  %v1447 = vlaneseq
  %v1448 = vshrl.u32 %v1447, 7
  %v1449 = vsub.s32 0, %v1448
  %v1450 = vrot.slane %v1445, %v1449
  %v1452 = vsel %vm284, %v1442, %v1450
  %v1453 = vld [vmem:[%s13] sm:$0xff]
  %v1454 = vld [vmem:[%s13 + $0x8] sm:$0xff]
  %v1455 = vld [vmem:[%s13 + $0x10] sm:$0xff]
  %v1456 = vld [vmem:[%s13 + $0x18] sm:$0xff]
  %vm1457 = vcmask 261120
  %v1459 = vsel %vm1457, %v1452, 0
  %1461 = vmatprep.subr.mxu0 0.0
  %1462 = vmatpush1.msra.mxu0 0.0
  %1463 = vmatprep.subr.mxu0 0.0
  %1464 = vmatpush1.msra.mxu0 0.0
  %1465 = vmatprep.subr.mxu0 0.0
  %1466 = vmatpush1.msra.mxu0 0.0
  %1467 = vmatprep.subr.mxu0 0.0
  %1468 = vmatpush1.msra.mxu0 0.0
  %1469 = vmatprep.subr.mxu0 0.0
  %1470 = vmatpush1.msra.mxu0 0.0
  %1471 = vmatprep.subr.mxu0 0.0
  %1472 = vmatpush1.msra.mxu0 0.0
  %1473 = vmatprep.subr.mxu0 0.0
  %1474 = vmatpush1.msra.mxu0 0.0
  %1475 = vmatprep.subr.mxu0 0.0
  %1476 = vmatpush1.msra.mxu0 0.0
  %1477 = vmatprep.subr.mxu0 0.0
  %1478 = vmatpush1.msra.mxu0 0.0
  %1479 = vmatprep.subr.mxu0 0.0
  %1480 = vmatpush1.msra.mxu0 0.0
  %1481 = vmatprep.subr.mxu0 0.0
  %1482 = vmatpush1.msra.mxu0 0.0
  %1483 = vmatprep.subr.mxu0 0.0
  %1484 = vmatpush1.msra.mxu0 0.0
  %1485 = vmatprep.subr.mxu0 0.0
  %1486 = vmatpush1.msra.mxu0 %v1456
  %1487 = vmatprep.subr.mxu0 0.0
  %1488 = vmatpush1.msra.mxu0 %v1455
  %1489 = vmatprep.subr.mxu0 0.0
  %1490 = vmatpush1.msra.mxu0 %v1454
  %1491 = vmatprep.subr.mxu0 0.0
  %1492 = vmatpush1.msra.mxu0 %v1453
  %1493 = vmatprep.subr.mxu0 0.0
  %1494 = vmatpush2.msra.mxu0 0.0
  %1495 = vmatprep.subr.mxu0 0.0
  %1496 = vmatpush2.msra.mxu0 0.0
  %1497 = vmatprep.subr.mxu0 0.0
  %1498 = vmatpush2.msra.mxu0 0.0
  %1499 = vmatprep.subr.mxu0 0.0
  %1500 = vmatpush2.msra.mxu0 0.0
  %1501 = vmatprep.subr.mxu0 0.0
  %1502 = vmatpush2.msra.mxu0 0.0
  %1503 = vmatprep.subr.mxu0 0.0
  %1504 = vmatpush2.msra.mxu0 0.0
  %1505 = vmatprep.subr.mxu0 0.0
  %1506 = vmatpush2.msra.mxu0 0.0
  %1507 = vmatprep.subr.mxu0 0.0
  %1508 = vmatpush2.msra.mxu0 0.0
  %1509 = vmatprep.subr.mxu0 0.0
  %1510 = vmatpush2.msra.mxu0 0.0
  %1511 = vmatprep.subr.mxu0 0.0
  %1512 = vmatpush2.msra.mxu0 0.0
  %1513 = vmatprep.subr.mxu0 0.0
  %1514 = vmatpush2.msra.mxu0 0.0
  %1515 = vmatprep.subr.mxu0 0.0
  %1516 = vmatpush2.msra.mxu0 0.0
  %1517 = vmatprep.subr.mxu0 0.0
  %1518 = vmatpush2.msra.mxu0 0.0
  %1519 = vmatprep.subr.mxu0 0.0
  %1520 = vmatpush2.msra.mxu0 0.0
  %1521 = vmatprep.subr.mxu0 0.0
  %1522 = vmatpush2.msra.mxu0 0.0
  %1523 = vmatprep.subr.mxu0 0.0
  %1524 = vmatpush2.msra.mxu0 0.0
  %1525 = vmatprep.mubr.f32.mxu0 0.0
  %1526 = vmatmul.mubr.f32.gmra.mxu0 %v1459
  %v1527 = vpop.f32.mrf.mxu0
  %v1528 = vadd.f32 0.0, %v1527
  %v1529 = vpop.f32.mrf.mxu0
  %1530 = vdwg.mxu0
  %v1531 = vlaneseq
  %v1532 = vshrl.u32 %v1531, 7
  %v1533 = vsub.s32 0, %v1532
  %v1534 = vrot.slane %v1528, %v1533
  %v1535 = vmul.f32 %v1320, %v1534
  %v1536 = vlaneseq
  %v1537 = vshrl.u32 %v1536, 7
  %v1538 = vsub.s32 1, %v1537
  %v1539 = vrot.slane %v1528, %v1538
  %v1540 = vadd.f32 %v1535, %v1539
  %vm1541 = vcmp.ge.f32.partialorder %v1540, 0.0
  %v1542 = vmul.f32 %v1540, 0.2
  %v1543 = vsel %vm1541, %v1540, %v1542
  %v1545 = vrot.slane %v1543, 2
  %v1547 = vrot.slane %v1543, 4
  %v1549 = vrot.slane %v1543, 6
  %v1551 = vpack.c.bf16 %v1543, %v1543
  %v1552 = vpack.c.bf16 %v1545, %v1545
  %v1553 = vpack.c.bf16 %v1547, %v1547
  %v1554 = vpack.c.bf16 %v1549, %v1549
  %v1555 = vld [vmem:[%s7] sm:$0xf]
  %v1556 = vld [vmem:[%s7 + $0x4] sm:$0xf]
  %v1557 = vld [vmem:[%s7 + $0x8] sm:$0xf]
  %v1558 = vld [vmem:[%s7 + $0xc] sm:$0xf]
  %v1559 = vld [vmem:[%s7 + $0x10] sm:$0xf]
  %v1560 = vld [vmem:[%s7 + $0x14] sm:$0xf]
  %v1561 = vld [vmem:[%s7 + $0x18] sm:$0xf]
  %v1562 = vld [vmem:[%s7 + $0x1c] sm:$0xf]
  %v1563 = vld [vmem:[%s7 + $0x20] sm:$0xf]
  %v1564 = vld [vmem:[%s7 + $0x24] sm:$0xf]
  %v1565 = vld [vmem:[%s7 + $0x28] sm:$0xf]
  %v1566 = vld [vmem:[%s7 + $0x2c] sm:$0xf]
  %v1567 = vld [vmem:[%s7 + $0x30] sm:$0xf]
  %v1568 = vld [vmem:[%s7 + $0x34] sm:$0xf]
  %v1569 = vld [vmem:[%s7 + $0x38] sm:$0xf]
  %v1570 = vld [vmem:[%s7 + $0x3c] sm:$0xf]
  %v1571 = vld [vmem:[%s7 + $0x40] sm:$0xf]
  %v1572 = vld [vmem:[%s7 + $0x44] sm:$0xf]
  %v1573 = vld [vmem:[%s7 + $0x48] sm:$0xf]
  %v1574 = vld [vmem:[%s7 + $0x4c] sm:$0xf]
  %v1575 = vld [vmem:[%s7 + $0x50] sm:$0xf]
  %v1576 = vld [vmem:[%s7 + $0x54] sm:$0xf]
  %v1577 = vld [vmem:[%s7 + $0x58] sm:$0xf]
  %v1578 = vld [vmem:[%s7 + $0x5c] sm:$0xf]
  %v1579 = vld [vmem:[%s7 + $0x60] sm:$0xf]
  %v1580 = vld [vmem:[%s7 + $0x64] sm:$0xf]
  %v1581 = vld [vmem:[%s7 + $0x68] sm:$0xf]
  %v1582 = vld [vmem:[%s7 + $0x6c] sm:$0xf]
  %v1583 = vld [vmem:[%s7 + $0x70] sm:$0xf]
  %v1584 = vld [vmem:[%s7 + $0x74] sm:$0xf]
  %v1585 = vld [vmem:[%s7 + $0x78] sm:$0xf]
  %v1586 = vld [vmem:[%s7 + $0x7c] sm:$0xf]
  %v1587 = vld [vmem:[%s7 + $0x80] sm:$0xf]
  %v1588 = vld [vmem:[%s7 + $0x84] sm:$0xf]
  %v1589 = vld [vmem:[%s7 + $0x88] sm:$0xf]
  %v1590 = vld [vmem:[%s7 + $0x8c] sm:$0xf]
  %v1591 = vld [vmem:[%s7 + $0x90] sm:$0xf]
  %v1592 = vld [vmem:[%s7 + $0x94] sm:$0xf]
  %v1593 = vld [vmem:[%s7 + $0x98] sm:$0xf]
  %v1594 = vld [vmem:[%s7 + $0x9c] sm:$0xf]
  %v1595 = vld [vmem:[%s7 + $0xa0] sm:$0xf]
  %v1596 = vld [vmem:[%s7 + $0xa4] sm:$0xf]
  %v1597 = vld [vmem:[%s7 + $0xa8] sm:$0xf]
  %v1598 = vld [vmem:[%s7 + $0xac] sm:$0xf]
  %v1599 = vld [vmem:[%s7 + $0xb0] sm:$0xf]
  %v1600 = vld [vmem:[%s7 + $0xb4] sm:$0xf]
  %v1601 = vld [vmem:[%s7 + $0xb8] sm:$0xf]
  %v1602 = vld [vmem:[%s7 + $0xbc] sm:$0xf]
  %v1603 = vld [vmem:[%s7 + $0xc0] sm:$0xf]
  %v1604 = vld [vmem:[%s7 + $0xc4] sm:$0xf]
  %v1605 = vld [vmem:[%s7 + $0xc8] sm:$0xf]
  %v1606 = vld [vmem:[%s7 + $0xcc] sm:$0xf]
  %v1607 = vld [vmem:[%s7 + $0xd0] sm:$0xf]
  %v1608 = vld [vmem:[%s7 + $0xd4] sm:$0xf]
  %v1609 = vld [vmem:[%s7 + $0xd8] sm:$0xf]
  %v1610 = vld [vmem:[%s7 + $0xdc] sm:$0xf]
  %v1611 = vld [vmem:[%s7 + $0xe0] sm:$0xf]
  %v1612 = vld [vmem:[%s7 + $0xe4] sm:$0xf]
  %v1613 = vld [vmem:[%s7 + $0xe8] sm:$0xf]
  %v1614 = vld [vmem:[%s7 + $0xec] sm:$0xf]
  %v1615 = vld [vmem:[%s7 + $0xf0] sm:$0xf]
  %v1616 = vld [vmem:[%s7 + $0xf4] sm:$0xf]
  %v1617 = vld [vmem:[%s7 + $0xf8] sm:$0xf]
  %v1618 = vld [vmem:[%s7 + $0xfc] sm:$0xf]
  %v1683 = vunpack.c.l.b16 %v1555
  %v1684 = vunpack.c.l.b16 %v1556
  %v1685 = vunpack.c.l.b16 %v1557
  %v1686 = vunpack.c.l.b16 %v1558
  %v1687 = vunpack.c.l.b16 %v1559
  %v1688 = vunpack.c.l.b16 %v1560
  %v1689 = vunpack.c.l.b16 %v1561
  %v1690 = vunpack.c.l.b16 %v1562
  %v1691 = vunpack.c.l.b16 %v1563
  %v1692 = vunpack.c.l.b16 %v1564
  %v1693 = vunpack.c.l.b16 %v1565
  %v1694 = vunpack.c.l.b16 %v1566
  %v1695 = vunpack.c.l.b16 %v1567
  %v1696 = vunpack.c.l.b16 %v1568
  %v1697 = vunpack.c.l.b16 %v1569
  %v1698 = vunpack.c.l.b16 %v1570
  %v1699 = vunpack.c.l.b16 %v1571
  %v1700 = vunpack.c.l.b16 %v1572
  %v1701 = vunpack.c.l.b16 %v1573
  %v1702 = vunpack.c.l.b16 %v1574
  %v1703 = vunpack.c.l.b16 %v1575
  %v1704 = vunpack.c.l.b16 %v1576
  %v1705 = vunpack.c.l.b16 %v1577
  %v1706 = vunpack.c.l.b16 %v1578
  %v1707 = vunpack.c.l.b16 %v1579
  %v1708 = vunpack.c.l.b16 %v1580
  %v1709 = vunpack.c.l.b16 %v1581
  %v1710 = vunpack.c.l.b16 %v1582
  %v1711 = vunpack.c.l.b16 %v1583
  %v1712 = vunpack.c.l.b16 %v1584
  %v1713 = vunpack.c.l.b16 %v1585
  %v1714 = vunpack.c.l.b16 %v1586
  %v1715 = vunpack.c.l.b16 %v1587
  %v1716 = vunpack.c.l.b16 %v1588
  %v1717 = vunpack.c.l.b16 %v1589
  %v1718 = vunpack.c.l.b16 %v1590
  %v1719 = vunpack.c.l.b16 %v1591
  %v1720 = vunpack.c.l.b16 %v1592
  %v1721 = vunpack.c.l.b16 %v1593
  %v1722 = vunpack.c.l.b16 %v1594
  %v1723 = vunpack.c.l.b16 %v1595
  %v1724 = vunpack.c.l.b16 %v1596
  %v1725 = vunpack.c.l.b16 %v1597
  %v1726 = vunpack.c.l.b16 %v1598
  %v1727 = vunpack.c.l.b16 %v1599
  %v1728 = vunpack.c.l.b16 %v1600
  %v1729 = vunpack.c.l.b16 %v1601
  %v1730 = vunpack.c.l.b16 %v1602
  %v1731 = vunpack.c.l.b16 %v1603
  %v1732 = vunpack.c.l.b16 %v1604
  %v1733 = vunpack.c.l.b16 %v1605
  %v1734 = vunpack.c.l.b16 %v1606
  %v1735 = vunpack.c.l.b16 %v1607
  %v1736 = vunpack.c.l.b16 %v1608
  %v1737 = vunpack.c.l.b16 %v1609
  %v1738 = vunpack.c.l.b16 %v1610
  %v1739 = vunpack.c.l.b16 %v1611
  %v1740 = vunpack.c.l.b16 %v1612
  %v1741 = vunpack.c.l.b16 %v1613
  %v1742 = vunpack.c.l.b16 %v1614
  %v1743 = vunpack.c.l.b16 %v1615
  %v1744 = vunpack.c.l.b16 %v1616
  %v1745 = vunpack.c.l.b16 %v1617
  %v1746 = vunpack.c.l.b16 %v1618
  %v1747 = vpack.c.b16 %v1684, %v1683
  %v1748 = vpack.c.b16 %v1686, %v1685
  %v1749 = vpack.c.b16 %v1688, %v1687
  %v1750 = vpack.c.b16 %v1690, %v1689
  %v1751 = vpack.c.b16 %v1692, %v1691
  %v1752 = vpack.c.b16 %v1694, %v1693
  %v1753 = vpack.c.b16 %v1696, %v1695
  %v1754 = vpack.c.b16 %v1698, %v1697
  %v1755 = vpack.c.b16 %v1700, %v1699
  %v1756 = vpack.c.b16 %v1702, %v1701
  %v1757 = vpack.c.b16 %v1704, %v1703
  %v1758 = vpack.c.b16 %v1706, %v1705
  %v1759 = vpack.c.b16 %v1708, %v1707
  %v1760 = vpack.c.b16 %v1710, %v1709
  %v1761 = vpack.c.b16 %v1712, %v1711
  %v1762 = vpack.c.b16 %v1714, %v1713
  %v1763 = vpack.c.b16 %v1716, %v1715
  %v1764 = vpack.c.b16 %v1718, %v1717
  %v1765 = vpack.c.b16 %v1720, %v1719
  %v1766 = vpack.c.b16 %v1722, %v1721
  %v1767 = vpack.c.b16 %v1724, %v1723
  %v1768 = vpack.c.b16 %v1726, %v1725
  %v1769 = vpack.c.b16 %v1728, %v1727
  %v1770 = vpack.c.b16 %v1730, %v1729
  %v1771 = vpack.c.b16 %v1732, %v1731
  %v1772 = vpack.c.b16 %v1734, %v1733
  %v1773 = vpack.c.b16 %v1736, %v1735
  %v1774 = vpack.c.b16 %v1738, %v1737
  %v1775 = vpack.c.b16 %v1740, %v1739
  %v1776 = vpack.c.b16 %v1742, %v1741
  %v1777 = vpack.c.b16 %v1744, %v1743
  %v1778 = vpack.c.b16 %v1746, %v1745
  %1811 = vmatprep.subr.bf16.mxu0 0
  %1812 = vmatpush1.bf16.msra.mxu0 %v1754
  %1813 = vmatprep.subr.bf16.mxu0 0
  %1814 = vmatpush1.bf16.msra.mxu0 %v1753
  %1815 = vmatprep.subr.bf16.mxu0 0
  %1816 = vmatpush1.bf16.msra.mxu0 %v1752
  %1817 = vmatprep.subr.bf16.mxu0 0
  %1818 = vmatpush1.bf16.msra.mxu0 %v1751
  %1819 = vmatprep.subr.bf16.mxu0 0
  %1820 = vmatpush1.bf16.msra.mxu0 %v1750
  %1821 = vmatprep.subr.bf16.mxu0 0
  %1822 = vmatpush1.bf16.msra.mxu0 %v1749
  %1823 = vmatprep.subr.bf16.mxu0 0
  %1824 = vmatpush1.bf16.msra.mxu0 %v1748
  %1825 = vmatprep.subr.bf16.mxu0 0
  %1826 = vmatpush1.bf16.msra.mxu0 %v1747
  %1827 = vmatprep.subr.bf16.mxu0 0
  %1828 = vmatpush2.bf16.msra.mxu0 %v1762
  %1829 = vmatprep.subr.bf16.mxu0 0
  %1830 = vmatpush2.bf16.msra.mxu0 %v1761
  %1831 = vmatprep.subr.bf16.mxu0 0
  %1832 = vmatpush2.bf16.msra.mxu0 %v1760
  %1833 = vmatprep.subr.bf16.mxu0 0
  %1834 = vmatpush2.bf16.msra.mxu0 %v1759
  %1835 = vmatprep.subr.bf16.mxu0 0
  %1836 = vmatpush2.bf16.msra.mxu0 %v1758
  %1837 = vmatprep.subr.bf16.mxu0 0
  %1838 = vmatpush2.bf16.msra.mxu0 %v1757
  %1839 = vmatprep.subr.bf16.mxu0 0
  %1840 = vmatpush2.bf16.msra.mxu0 %v1756
  %1841 = vmatprep.subr.bf16.mxu0 0
  %1842 = vmatpush2.bf16.msra.mxu0 %v1755
  %1843 = vmatprep.mubr.bf16.mxu0 %v1552
  %1844 = vmatmul.mubr.bf16.gmra.mxu0 %v1551
  %v1845 = vpop.f32.mrf.mxu0
  %v1846 = vadd.f32 0.0, %v1845
  %v1847 = vpop.f32.mrf.mxu0
  %v1848 = vpop.f32.mrf.mxu0
  %v1849 = vpop.f32.mrf.mxu0
  %1850 = vdwg.mxu0
  %1851 = vmatprep.subr.bf16.mxu0 0
  %1852 = vmatpush1.bf16.msra.mxu0 %v1770
  %1853 = vmatprep.subr.bf16.mxu0 0
  %1854 = vmatpush1.bf16.msra.mxu0 %v1769
  %1855 = vmatprep.subr.bf16.mxu0 0
  %1856 = vmatpush1.bf16.msra.mxu0 %v1768
  %1857 = vmatprep.subr.bf16.mxu0 0
  %1858 = vmatpush1.bf16.msra.mxu0 %v1767
  %1859 = vmatprep.subr.bf16.mxu0 0
  %1860 = vmatpush1.bf16.msra.mxu0 %v1766
  %1861 = vmatprep.subr.bf16.mxu0 0
  %1862 = vmatpush1.bf16.msra.mxu0 %v1765
  %1863 = vmatprep.subr.bf16.mxu0 0
  %1864 = vmatpush1.bf16.msra.mxu0 %v1764
  %1865 = vmatprep.subr.bf16.mxu0 0
  %1866 = vmatpush1.bf16.msra.mxu0 %v1763
  %1867 = vmatprep.subr.bf16.mxu0 0
  %1868 = vmatpush2.bf16.msra.mxu0 %v1778
  %1869 = vmatprep.subr.bf16.mxu0 0
  %1870 = vmatpush2.bf16.msra.mxu0 %v1777
  %1871 = vmatprep.subr.bf16.mxu0 0
  %1872 = vmatpush2.bf16.msra.mxu0 %v1776
  %1873 = vmatprep.subr.bf16.mxu0 0
  %1874 = vmatpush2.bf16.msra.mxu0 %v1775
  %1875 = vmatprep.subr.bf16.mxu0 0
  %1876 = vmatpush2.bf16.msra.mxu0 %v1774
  %1877 = vmatprep.subr.bf16.mxu0 0
  %1878 = vmatpush2.bf16.msra.mxu0 %v1773
  %1879 = vmatprep.subr.bf16.mxu0 0
  %1880 = vmatpush2.bf16.msra.mxu0 %v1772
  %1881 = vmatprep.subr.bf16.mxu0 0
  %1882 = vmatpush2.bf16.msra.mxu0 %v1771
  %1883 = vmatprep.mubr.bf16.mxu0 %v1554
  %1884 = vmatmul.mubr.bf16.gmra.mxu0 %v1553
  %v1885 = vpop.f32.mrf.mxu0
  %v1886 = vadd.f32 %v1846, %v1885
  %v1887 = vpop.f32.mrf.mxu0
  %v1888 = vpop.f32.mrf.mxu0
  %v1889 = vpop.f32.mrf.mxu0
  %1890 = vdwg.mxu0
  %v1891 = vsub.f32 0.0, %v1886
  %v1892 = vmul.f32 %v1891, 1.442695
  %v1893 = vpow.pop %v1892
  %v1894 = vadd.f32 %v1893, 1.0
  %v1895 = vrcp.pop %v1894
  %v1896 = vmul.f32 1.0, %v1895
  %vm1897 = vcmask 1024
  %1898 = vst.msk [vmem:[%s16] sm:$0x3] %vm1897, %v1896
  // Predicated region
  $region66: #{forward.1} parent=0 // pred_check
    _
  $region67: #{forward.1} parent=0 // pred_check_branch
    %1900 = sbr.rel (0) target = $region69
  $region68: #{forward.1} parent=0 // pred_region
    _
  $region69: #{forward.1} parent=0 // pred_fallthru
    _
  // Predicated region
  $region70: #{forward.1} parent=0 // pred_check
    _
  $region71: #{forward.1} parent=0 // pred_check_branch
    %1902 = sbr.rel (0) target = $region73
  $region72: #{forward.1} parent=0 // pred_region
    _
  $region73: #{forward.1} parent=0 // pred_fallthru
    _

</llo_original>
